<compile_context>
chip_gen: v5e
topology: v5e:2x2
jax: 0.10.0
libtpu: 0.0.40
codegen_flags: <defaults>
</compile_context>

<pallas_src>
import math
from functools import partial

import jax
import jax.numpy as jnp
from jax import lax
from jax.experimental import pallas as pl
from jax.experimental.pallas import tpu as pltpu


def _seq_encoder_kernel(x_ref, pe_ref, wq_ref, wk_ref, wv_ref, wo_ref,
                        w1_ref, w2_ref, vec_ref, o_ref, *, nhead):
    # Constant blocks (index_map is constant -> fetched once, stay resident).
    pe = pe_ref[...].astype(jnp.float32)            # (S, H)
    wq = wq_ref[...].astype(jnp.float32)            # (H, H)  pre-transposed
    wk = wk_ref[...].astype(jnp.float32)
    wv = wv_ref[...].astype(jnp.float32)
    wo = wo_ref[...].astype(jnp.float32)            # (H, H)  pre-transposed
    w1 = w1_ref[...].astype(jnp.float32)            # (H, F)  pre-transposed
    w2 = w2_ref[...].astype(jnp.float32)            # (F, H)  pre-transposed
    vecs = vec_ref[...].astype(jnp.float32)         # (10, H) biases + LN params
    bq, bk, bv, bo = vecs[0:1], vecs[1:2], vecs[2:3], vecs[3:4]
    b1, b2 = vecs[4:5], vecs[5:6]
    g1, be1, g2, be2 = vecs[6:7], vecs[7:8], vecs[8:9], vecs[9:10]

    tb, S, H = x_ref.shape
    dh = H // nhead
    scale = 1.0 / math.sqrt(dh)
    qkT = (((1,), (1,)), ((), ()))   # contract last dims: (S,dh)x(S,dh)->(S,S)

    for i in range(tb):              # static unroll over sequences in this tile
        # positional encoding
        x = x_ref[i].astype(jnp.float32) + pe                       # (S, H)

        # QKV projections (weights already transposed -> direct contraction)
        q = jnp.dot(x, wq, preferred_element_type=jnp.float32) + bq
        k = jnp.dot(x, wk, preferred_element_type=jnp.float32) + bk
        v = jnp.dot(x, wv, preferred_element_type=jnp.float32) + bv

        # multi-head self-attention; output projection folded into head loop
        sa = jnp.zeros((S, H), jnp.float32)
        for h in range(nhead):
            sl = slice(h * dh, (h + 1) * dh)
            s = lax.dot_general(q[:, sl], k[:, sl], qkT,
                                preferred_element_type=jnp.float32) * scale
            s = s - jnp.max(s, axis=-1, keepdims=True)
            p = jnp.exp(s)
            p = p / jnp.sum(p, axis=-1, keepdims=True)
            o_h = jnp.dot(p, v[:, sl], preferred_element_type=jnp.float32)
            sa = sa + jnp.dot(o_h, wo[sl, :],
                              preferred_element_type=jnp.float32)
        sa = sa + bo

        # residual + LayerNorm1 (post-norm, eps=1e-5); dropout = identity (eval)
        y = x + sa
        mu = jnp.mean(y, axis=-1, keepdims=True)
        yc = y - mu
        var = jnp.mean(yc * yc, axis=-1, keepdims=True)
        y = yc * lax.rsqrt(var + 1e-5) * g1 + be1

        # feed-forward: relu(y @ W1 + b1) @ W2 + b2
        hdn = jnp.maximum(
            jnp.dot(y, w1, preferred_element_type=jnp.float32) + b1, 0.0)
        ff = jnp.dot(hdn, w2, preferred_element_type=jnp.float32) + b2

        # residual + LayerNorm2
        z = y + ff
        mu2 = jnp.mean(z, axis=-1, keepdims=True)
        zc = z - mu2
        var2 = jnp.mean(zc * zc, axis=-1, keepdims=True)
        out = zc * lax.rsqrt(var2 + 1e-5) * g2 + be2

        o_ref[i] = out.astype(o_ref.dtype)


def _pe_table(S, H):
    pos = jnp.arange(S, dtype=jnp.float32)[:, None]
    div = jnp.exp(jnp.arange(0, H, 2, dtype=jnp.float32)
                  * (-math.log(10000.0) / H))
    pe = jnp.zeros((S, H), dtype=jnp.float32)
    pe = pe.at[:, 0::2].set(jnp.sin(pos * div))
    pe = pe.at[:, 1::2].set(jnp.cos(pos * div))
    return pe


def sequence_encoder_forward(x, params, *, nhead, tb=1,
                             vmem_limit_bytes=48 * 1024 * 1024):
    """x: (B, S, H) f32; params: torch-layout weights of the encoder layer."""
    B, S, H = x.shape
    F = params["linear1_w"].shape[0]
    assert H % nhead == 0
    assert F == H, "module fixes dim_feedforward == hidden_size"
    assert B % tb == 0

    # Hoisted constants: PE table, pre-transposed weights, packed bias/LN vecs.
    pe = _pe_table(S, H)
    w = params["in_proj_w"]
    wq_t, wk_t, wv_t = w[0:H].T, w[H:2 * H].T, w[2 * H:3 * H].T
    wo_t = params["out_proj_w"].T
    w1_t = params["linear1_w"].T          # (H, F)
    w2_t = params["linear2_w"].T          # (F, H)
    b = params["in_proj_b"]
    vecs = jnp.stack([
        b[0:H], b[H:2 * H], b[2 * H:3 * H],
        params["out_proj_b"], params["linear1_b"], params["linear2_b"],
        params["norm1_w"], params["norm1_b"],
        params["norm2_w"], params["norm2_b"],
    ], axis=0).astype(jnp.float32)        # (10, H)

    const = lambda b_: (0, 0)             # constant-index blocks (DMA'd once)
    kernel = partial(_seq_encoder_kernel, nhead=nhead)

    return pl.pallas_call(
        kernel,
        out_shape=jax.ShapeDtypeStruct((B, S, H), x.dtype),
        grid_spec=pltpu.PrefetchScalarGridSpec(
            num_scalar_prefetch=0,
            grid=(B // tb,),
            in_specs=[
                pl.BlockSpec((tb, S, H), lambda b_: (b_, 0, 0)),   # x tile
                pl.BlockSpec((S, H), const),                       # pe
                pl.BlockSpec((H, H), const),                       # Wq^T
                pl.BlockSpec((H, H), const),                       # Wk^T
                pl.BlockSpec((H, H), const),                       # Wv^T
                pl.BlockSpec((H, H), const),                       # Wo^T
                pl.BlockSpec((H, F), const),                       # W1^T
                pl.BlockSpec((F, H), const),                       # W2^T
                pl.BlockSpec((10, H), const),                      # biases + LN
            ],
            out_specs=pl.BlockSpec((tb, S, H), lambda b_: (b_, 0, 0)),
        ),
        compiler_params=pltpu.CompilerParams(
            dimension_semantics=("parallel",),
            vmem_limit_bytes=vmem_limit_bytes),
    )(x, pe, wq_t, wk_t, wv_t, wo_t, w1_t, w2_t, vecs)


def _reference(x, params, nhead):
    """Pure-JAX mirror of the torch eval-mode forward."""
    B, S, H = x.shape
    dh = H // nhead
    x = x + _pe_table(S, H)[None]
    wq, wk, wv = jnp.split(params["in_proj_w"], 3, axis=0)
    bq, bk, bv = jnp.split(params["in_proj_b"], 3, axis=0)
    q = x @ wq.T + bq
    k = x @ wk.T + bk
    v = x @ wv.T + bv
    sh = lambda t: t.reshape(B, S, nhead, dh).transpose(0, 2, 1, 3)
    s = jnp.einsum('bhsd,bhtd->bhst', sh(q), sh(k)) / math.sqrt(dh)
    p = jax.nn.softmax(s, axis=-1)
    a = jnp.einsum('bhst,bhtd->bhsd', p, sh(v))
    a = a.transpose(0, 2, 1, 3).reshape(B, S, H)
    sa = a @ params["out_proj_w"].T + params["out_proj_b"]

    def ln(t, w, b_):
        mu = jnp.mean(t, axis=-1, keepdims=True)
        var = jnp.mean((t - mu) ** 2, axis=-1, keepdims=True)
        return (t - mu) / jnp.sqrt(var + 1e-5) * w + b_

    y = ln(x + sa, params["norm1_w"], params["norm1_b"])
    ffn = (jax.nn.relu(y @ params["linear1_w"].T + params["linear1_b"])
           @ params["linear2_w"].T + params["linear2_b"])
    return ln(y + ffn, params["norm2_w"], params["norm2_b"])


if __name__ == "__main__":
    key = jax.random.PRNGKey(0)
    keys = jax.random.split(key, 14)

    batch, seq, hidden, nhead = 2, 8, 32, 4
    F = hidden  # dim_feedforward == hidden_size in the module

    init = lambda k, shape, s=0.1: s * jax.random.normal(k, shape, jnp.float32)
    params = {
        "in_proj_w": init(keys[0], (3 * hidden, hidden)),
        "in_proj_b": init(keys[1], (3 * hidden,)),
        "out_proj_w": init(keys[2], (hidden, hidden)),
        "out_proj_b": init(keys[3], (hidden,)),
        "linear1_w": init(keys[4], (F, hidden)),
        "linear1_b": init(keys[5], (F,)),
        "linear2_w": init(keys[6], (hidden, F)),
        "linear2_b": init(keys[7], (hidden,)),
        "norm1_w": 1.0 + init(keys[8], (hidden,), 0.01),
        "norm1_b": init(keys[9], (hidden,), 0.01),
        "norm2_w": 1.0 + init(keys[10], (hidden,), 0.01),
        "norm2_b": init(keys[11], (hidden,), 0.01),
    }
    x = jax.random.normal(keys[12], (batch, seq, hidden), dtype=jnp.float32)

    out = sequence_encoder_forward(x, params, nhead=nhead)
    out = jax.block_until_ready(out)

    ref = _reference(x, params, nhead)
    assert out.shape == (batch, seq, hidden)
    err = float(jnp.max(jnp.abs(out - ref)))
    assert jnp.allclose(out, ref, atol=2e-3, rtol=2e-3), err

    print("KERNEL_OK")
</pallas_src>

<mosaic_0001>
module attributes {stable_mosaic.version = 11 : i64} {
  func.func @_seq_encoder_kernel(%arg0: i32, %arg1: memref<1x8x32xf32, #tpu.memory_space<vmem>>, %arg2: memref<8x32xf32, #tpu.memory_space<vmem>>, %arg3: memref<32x32xf32, #tpu.memory_space<vmem>>, %arg4: memref<32x32xf32, #tpu.memory_space<vmem>>, %arg5: memref<32x32xf32, #tpu.memory_space<vmem>>, %arg6: memref<32x32xf32, #tpu.memory_space<vmem>>, %arg7: memref<32x32xf32, #tpu.memory_space<vmem>>, %arg8: memref<32x32xf32, #tpu.memory_space<vmem>>, %arg9: memref<10x32xf32, #tpu.memory_space<vmem>>, %arg10: memref<1x8x32xf32, #tpu.memory_space<vmem>>) attributes {dimension_semantics = [#tpu.dimension_semantics<parallel>], iteration_bounds = array<i64: 2>, scalar_prefetch = 0 : i64, scratch_operands = 0 : i64, tpu.core_type = #tpu.core_type<tc>, window_params = [{transform_indices = @transform_0, window_bounds = array<i64: 1, 8, 32>}, {pipeline_mode = #tpu.pipeline_mode<synchronous>, transform_indices = @transform_1, window_bounds = array<i64: 8, 32>}, {pipeline_mode = #tpu.pipeline_mode<synchronous>, transform_indices = @transform_2, window_bounds = array<i64: 32, 32>}, {pipeline_mode = #tpu.pipeline_mode<synchronous>, transform_indices = @transform_3, window_bounds = array<i64: 32, 32>}, {pipeline_mode = #tpu.pipeline_mode<synchronous>, transform_indices = @transform_4, window_bounds = array<i64: 32, 32>}, {pipeline_mode = #tpu.pipeline_mode<synchronous>, transform_indices = @transform_5, window_bounds = array<i64: 32, 32>}, {pipeline_mode = #tpu.pipeline_mode<synchronous>, transform_indices = @transform_6, window_bounds = array<i64: 32, 32>}, {pipeline_mode = #tpu.pipeline_mode<synchronous>, transform_indices = @transform_7, window_bounds = array<i64: 32, 32>}, {pipeline_mode = #tpu.pipeline_mode<synchronous>, transform_indices = @transform_8, window_bounds = array<i64: 10, 32>}, {transform_indices = @transform_9, window_bounds = array<i64: 1, 8, 32>}]} {
    %c0 = arith.constant 0 : index
    %c0_0 = arith.constant 0 : index
    %0 = vector.load %arg2[%c0, %c0_0] : memref<8x32xf32, #tpu.memory_space<vmem>>, vector<8x32xf32>
    %c0_1 = arith.constant 0 : index
    %c0_2 = arith.constant 0 : index
    %1 = vector.load %arg3[%c0_1, %c0_2] : memref<32x32xf32, #tpu.memory_space<vmem>>, vector<32x32xf32>
    %c0_3 = arith.constant 0 : index
    %c0_4 = arith.constant 0 : index
    %2 = vector.load %arg4[%c0_3, %c0_4] : memref<32x32xf32, #tpu.memory_space<vmem>>, vector<32x32xf32>
    %c0_5 = arith.constant 0 : index
    %c0_6 = arith.constant 0 : index
    %3 = vector.load %arg5[%c0_5, %c0_6] : memref<32x32xf32, #tpu.memory_space<vmem>>, vector<32x32xf32>
    %c0_7 = arith.constant 0 : index
    %c0_8 = arith.constant 0 : index
    %4 = vector.load %arg6[%c0_7, %c0_8] : memref<32x32xf32, #tpu.memory_space<vmem>>, vector<32x32xf32>
    %c0_9 = arith.constant 0 : index
    %c0_10 = arith.constant 0 : index
    %5 = vector.load %arg7[%c0_9, %c0_10] : memref<32x32xf32, #tpu.memory_space<vmem>>, vector<32x32xf32>
    %c0_11 = arith.constant 0 : index
    %c0_12 = arith.constant 0 : index
    %6 = vector.load %arg8[%c0_11, %c0_12] : memref<32x32xf32, #tpu.memory_space<vmem>>, vector<32x32xf32>
    %c0_13 = arith.constant 0 : index
    %c0_14 = arith.constant 0 : index
    %7 = vector.load %arg9[%c0_13, %c0_14] : memref<10x32xf32, #tpu.memory_space<vmem>>, vector<10x32xf32>
    %8 = vector.extract_strided_slice %7 {offsets = [0, 0], sizes = [1, 32], strides = [1, 1]} : vector<10x32xf32> to vector<1x32xf32>
    %9 = vector.extract_strided_slice %7 {offsets = [1, 0], sizes = [1, 32], strides = [1, 1]} : vector<10x32xf32> to vector<1x32xf32>
    %10 = vector.extract_strided_slice %7 {offsets = [2, 0], sizes = [1, 32], strides = [1, 1]} : vector<10x32xf32> to vector<1x32xf32>
    %11 = vector.extract_strided_slice %7 {offsets = [3, 0], sizes = [1, 32], strides = [1, 1]} : vector<10x32xf32> to vector<1x32xf32>
    %12 = vector.extract_strided_slice %7 {offsets = [4, 0], sizes = [1, 32], strides = [1, 1]} : vector<10x32xf32> to vector<1x32xf32>
    %13 = vector.extract_strided_slice %7 {offsets = [5, 0], sizes = [1, 32], strides = [1, 1]} : vector<10x32xf32> to vector<1x32xf32>
    %14 = vector.extract_strided_slice %7 {offsets = [6, 0], sizes = [1, 32], strides = [1, 1]} : vector<10x32xf32> to vector<1x32xf32>
    %15 = vector.extract_strided_slice %7 {offsets = [7, 0], sizes = [1, 32], strides = [1, 1]} : vector<10x32xf32> to vector<1x32xf32>
    %16 = vector.extract_strided_slice %7 {offsets = [8, 0], sizes = [1, 32], strides = [1, 1]} : vector<10x32xf32> to vector<1x32xf32>
    %17 = vector.extract_strided_slice %7 {offsets = [9, 0], sizes = [1, 32], strides = [1, 1]} : vector<10x32xf32> to vector<1x32xf32>
    %c0_15 = arith.constant 0 : index
    %c0_16 = arith.constant 0 : index
    %c0_17 = arith.constant 0 : index
    %18 = vector.load %arg1[%c0_15, %c0_16, %c0_17] : memref<1x8x32xf32, #tpu.memory_space<vmem>>, vector<1x8x32xf32>
    %19 = vector.shape_cast %18 : vector<1x8x32xf32> to vector<8x32xf32>
    %20 = arith.addf %19, %0 : vector<8x32xf32>
    %cst = arith.constant dense<0.000000e+00> : vector<8x32xf32>
    %21 = tpu.matmul %20, %1, %cst {dimension_numbers = #tpu.dot_dimension_numbers<[1], [0], [0], [1], [0, 0, 1, 1], [], []>} : vector<8x32xf32>, vector<32x32xf32>, vector<8x32xf32> -> vector<8x32xf32>
    %22 = vector.broadcast %8 : vector<1x32xf32> to vector<8x32xf32>
    %23 = arith.addf %21, %22 : vector<8x32xf32>
    %cst_18 = arith.constant dense<0.000000e+00> : vector<8x32xf32>
    %24 = tpu.matmul %20, %2, %cst_18 {dimension_numbers = #tpu.dot_dimension_numbers<[1], [0], [0], [1], [0, 0, 1, 1], [], []>} : vector<8x32xf32>, vector<32x32xf32>, vector<8x32xf32> -> vector<8x32xf32>
    %25 = vector.broadcast %9 : vector<1x32xf32> to vector<8x32xf32>
    %26 = arith.addf %24, %25 : vector<8x32xf32>
    %cst_19 = arith.constant dense<0.000000e+00> : vector<8x32xf32>
    %27 = tpu.matmul %20, %3, %cst_19 {dimension_numbers = #tpu.dot_dimension_numbers<[1], [0], [0], [1], [0, 0, 1, 1], [], []>} : vector<8x32xf32>, vector<32x32xf32>, vector<8x32xf32> -> vector<8x32xf32>
    %28 = vector.broadcast %10 : vector<1x32xf32> to vector<8x32xf32>
    %29 = arith.addf %27, %28 : vector<8x32xf32>
    %cst_20 = arith.constant 0.000000e+00 : f32
    %30 = vector.broadcast %cst_20 : f32 to vector<8x32xf32>
    %31 = vector.extract_strided_slice %23 {offsets = [0, 0], sizes = [8, 8], strides = [1, 1]} : vector<8x32xf32> to vector<8x8xf32>
    %32 = vector.extract_strided_slice %26 {offsets = [0, 0], sizes = [8, 8], strides = [1, 1]} : vector<8x32xf32> to vector<8x8xf32>
    %cst_21 = arith.constant dense<0.000000e+00> : vector<8x8xf32>
    %33 = tpu.matmul %31, %32, %cst_21 {dimension_numbers = #tpu.dot_dimension_numbers<[1], [1], [0], [0], [0, 0, 1, 0], [], []>} : vector<8x8xf32>, vector<8x8xf32>, vector<8x8xf32> -> vector<8x8xf32>
    %cst_22 = arith.constant 0.353553385 : f32
    %34 = vector.broadcast %cst_22 : f32 to vector<8x8xf32>
    %35 = arith.mulf %33, %34 : vector<8x8xf32>
    %cst_23 = arith.constant dense<0xFF800000> : vector<8xf32>
    %36 = vector.multi_reduction <maximumf>, %35, %cst_23 [1] : vector<8x8xf32> to vector<8xf32>
    %37 = vector.shape_cast %36 : vector<8xf32> to vector<8x1xf32>
    %38 = vector.broadcast %37 : vector<8x1xf32> to vector<8x8xf32>
    %39 = arith.subf %35, %38 : vector<8x8xf32>
    %40 = math.exp %39 : vector<8x8xf32>
    %cst_24 = arith.constant dense<0.000000e+00> : vector<8xf32>
    %41 = vector.multi_reduction <add>, %40, %cst_24 [1] : vector<8x8xf32> to vector<8xf32>
    %42 = vector.shape_cast %41 : vector<8xf32> to vector<8x1xf32>
    %43 = vector.broadcast %42 : vector<8x1xf32> to vector<8x8xf32>
    %44 = arith.divf %40, %43 : vector<8x8xf32>
    %45 = vector.extract_strided_slice %29 {offsets = [0, 0], sizes = [8, 8], strides = [1, 1]} : vector<8x32xf32> to vector<8x8xf32>
    %cst_25 = arith.constant dense<0.000000e+00> : vector<8x8xf32>
    %46 = tpu.matmul %44, %45, %cst_25 {dimension_numbers = #tpu.dot_dimension_numbers<[1], [0], [0], [1], [0, 0, 1, 1], [], []>} : vector<8x8xf32>, vector<8x8xf32>, vector<8x8xf32> -> vector<8x8xf32>
    %47 = vector.extract_strided_slice %4 {offsets = [0, 0], sizes = [8, 32], strides = [1, 1]} : vector<32x32xf32> to vector<8x32xf32>
    %cst_26 = arith.constant dense<0.000000e+00> : vector<8x32xf32>
    %48 = tpu.matmul %46, %47, %cst_26 {dimension_numbers = #tpu.dot_dimension_numbers<[1], [0], [0], [1], [0, 0, 1, 1], [], []>} : vector<8x8xf32>, vector<8x32xf32>, vector<8x32xf32> -> vector<8x32xf32>
    %49 = arith.addf %30, %48 : vector<8x32xf32>
    %50 = vector.extract_strided_slice %23 {offsets = [0, 8], sizes = [8, 8], strides = [1, 1]} : vector<8x32xf32> to vector<8x8xf32>
    %51 = vector.extract_strided_slice %26 {offsets = [0, 8], sizes = [8, 8], strides = [1, 1]} : vector<8x32xf32> to vector<8x8xf32>
    %cst_27 = arith.constant dense<0.000000e+00> : vector<8x8xf32>
    %52 = tpu.matmul %50, %51, %cst_27 {dimension_numbers = #tpu.dot_dimension_numbers<[1], [1], [0], [0], [0, 0, 1, 0], [], []>} : vector<8x8xf32>, vector<8x8xf32>, vector<8x8xf32> -> vector<8x8xf32>
    %cst_28 = arith.constant 0.353553385 : f32
    %53 = vector.broadcast %cst_28 : f32 to vector<8x8xf32>
    %54 = arith.mulf %52, %53 : vector<8x8xf32>
    %cst_29 = arith.constant dense<0xFF800000> : vector<8xf32>
    %55 = vector.multi_reduction <maximumf>, %54, %cst_29 [1] : vector<8x8xf32> to vector<8xf32>
    %56 = vector.shape_cast %55 : vector<8xf32> to vector<8x1xf32>
    %57 = vector.broadcast %56 : vector<8x1xf32> to vector<8x8xf32>
    %58 = arith.subf %54, %57 : vector<8x8xf32>
    %59 = math.exp %58 : vector<8x8xf32>
    %cst_30 = arith.constant dense<0.000000e+00> : vector<8xf32>
    %60 = vector.multi_reduction <add>, %59, %cst_30 [1] : vector<8x8xf32> to vector<8xf32>
    %61 = vector.shape_cast %60 : vector<8xf32> to vector<8x1xf32>
    %62 = vector.broadcast %61 : vector<8x1xf32> to vector<8x8xf32>
    %63 = arith.divf %59, %62 : vector<8x8xf32>
    %64 = vector.extract_strided_slice %29 {offsets = [0, 8], sizes = [8, 8], strides = [1, 1]} : vector<8x32xf32> to vector<8x8xf32>
    %cst_31 = arith.constant dense<0.000000e+00> : vector<8x8xf32>
    %65 = tpu.matmul %63, %64, %cst_31 {dimension_numbers = #tpu.dot_dimension_numbers<[1], [0], [0], [1], [0, 0, 1, 1], [], []>} : vector<8x8xf32>, vector<8x8xf32>, vector<8x8xf32> -> vector<8x8xf32>
    %66 = vector.extract_strided_slice %4 {offsets = [8, 0], sizes = [8, 32], strides = [1, 1]} : vector<32x32xf32> to vector<8x32xf32>
    %cst_32 = arith.constant dense<0.000000e+00> : vector<8x32xf32>
    %67 = tpu.matmul %65, %66, %cst_32 {dimension_numbers = #tpu.dot_dimension_numbers<[1], [0], [0], [1], [0, 0, 1, 1], [], []>} : vector<8x8xf32>, vector<8x32xf32>, vector<8x32xf32> -> vector<8x32xf32>
    %68 = arith.addf %49, %67 : vector<8x32xf32>
    %69 = vector.extract_strided_slice %23 {offsets = [0, 16], sizes = [8, 8], strides = [1, 1]} : vector<8x32xf32> to vector<8x8xf32>
    %70 = vector.extract_strided_slice %26 {offsets = [0, 16], sizes = [8, 8], strides = [1, 1]} : vector<8x32xf32> to vector<8x8xf32>
    %cst_33 = arith.constant dense<0.000000e+00> : vector<8x8xf32>
    %71 = tpu.matmul %69, %70, %cst_33 {dimension_numbers = #tpu.dot_dimension_numbers<[1], [1], [0], [0], [0, 0, 1, 0], [], []>} : vector<8x8xf32>, vector<8x8xf32>, vector<8x8xf32> -> vector<8x8xf32>
    %cst_34 = arith.constant 0.353553385 : f32
    %72 = vector.broadcast %cst_34 : f32 to vector<8x8xf32>
    %73 = arith.mulf %71, %72 : vector<8x8xf32>
    %cst_35 = arith.constant dense<0xFF800000> : vector<8xf32>
    %74 = vector.multi_reduction <maximumf>, %73, %cst_35 [1] : vector<8x8xf32> to vector<8xf32>
    %75 = vector.shape_cast %74 : vector<8xf32> to vector<8x1xf32>
    %76 = vector.broadcast %75 : vector<8x1xf32> to vector<8x8xf32>
    %77 = arith.subf %73, %76 : vector<8x8xf32>
    %78 = math.exp %77 : vector<8x8xf32>
    %cst_36 = arith.constant dense<0.000000e+00> : vector<8xf32>
    %79 = vector.multi_reduction <add>, %78, %cst_36 [1] : vector<8x8xf32> to vector<8xf32>
    %80 = vector.shape_cast %79 : vector<8xf32> to vector<8x1xf32>
    %81 = vector.broadcast %80 : vector<8x1xf32> to vector<8x8xf32>
    %82 = arith.divf %78, %81 : vector<8x8xf32>
    %83 = vector.extract_strided_slice %29 {offsets = [0, 16], sizes = [8, 8], strides = [1, 1]} : vector<8x32xf32> to vector<8x8xf32>
    %cst_37 = arith.constant dense<0.000000e+00> : vector<8x8xf32>
    %84 = tpu.matmul %82, %83, %cst_37 {dimension_numbers = #tpu.dot_dimension_numbers<[1], [0], [0], [1], [0, 0, 1, 1], [], []>} : vector<8x8xf32>, vector<8x8xf32>, vector<8x8xf32> -> vector<8x8xf32>
    %85 = vector.extract_strided_slice %4 {offsets = [16, 0], sizes = [8, 32], strides = [1, 1]} : vector<32x32xf32> to vector<8x32xf32>
    %cst_38 = arith.constant dense<0.000000e+00> : vector<8x32xf32>
    %86 = tpu.matmul %84, %85, %cst_38 {dimension_numbers = #tpu.dot_dimension_numbers<[1], [0], [0], [1], [0, 0, 1, 1], [], []>} : vector<8x8xf32>, vector<8x32xf32>, vector<8x32xf32> -> vector<8x32xf32>
    %87 = arith.addf %68, %86 : vector<8x32xf32>
    %88 = vector.extract_strided_slice %23 {offsets = [0, 24], sizes = [8, 8], strides = [1, 1]} : vector<8x32xf32> to vector<8x8xf32>
    %89 = vector.extract_strided_slice %26 {offsets = [0, 24], sizes = [8, 8], strides = [1, 1]} : vector<8x32xf32> to vector<8x8xf32>
    %cst_39 = arith.constant dense<0.000000e+00> : vector<8x8xf32>
    %90 = tpu.matmul %88, %89, %cst_39 {dimension_numbers = #tpu.dot_dimension_numbers<[1], [1], [0], [0], [0, 0, 1, 0], [], []>} : vector<8x8xf32>, vector<8x8xf32>, vector<8x8xf32> -> vector<8x8xf32>
    %cst_40 = arith.constant 0.353553385 : f32
    %91 = vector.broadcast %cst_40 : f32 to vector<8x8xf32>
    %92 = arith.mulf %90, %91 : vector<8x8xf32>
    %cst_41 = arith.constant dense<0xFF800000> : vector<8xf32>
    %93 = vector.multi_reduction <maximumf>, %92, %cst_41 [1] : vector<8x8xf32> to vector<8xf32>
    %94 = vector.shape_cast %93 : vector<8xf32> to vector<8x1xf32>
    %95 = vector.broadcast %94 : vector<8x1xf32> to vector<8x8xf32>
    %96 = arith.subf %92, %95 : vector<8x8xf32>
    %97 = math.exp %96 : vector<8x8xf32>
    %cst_42 = arith.constant dense<0.000000e+00> : vector<8xf32>
    %98 = vector.multi_reduction <add>, %97, %cst_42 [1] : vector<8x8xf32> to vector<8xf32>
    %99 = vector.shape_cast %98 : vector<8xf32> to vector<8x1xf32>
    %100 = vector.broadcast %99 : vector<8x1xf32> to vector<8x8xf32>
    %101 = arith.divf %97, %100 : vector<8x8xf32>
    %102 = vector.extract_strided_slice %29 {offsets = [0, 24], sizes = [8, 8], strides = [1, 1]} : vector<8x32xf32> to vector<8x8xf32>
    %cst_43 = arith.constant dense<0.000000e+00> : vector<8x8xf32>
    %103 = tpu.matmul %101, %102, %cst_43 {dimension_numbers = #tpu.dot_dimension_numbers<[1], [0], [0], [1], [0, 0, 1, 1], [], []>} : vector<8x8xf32>, vector<8x8xf32>, vector<8x8xf32> -> vector<8x8xf32>
    %104 = vector.extract_strided_slice %4 {offsets = [24, 0], sizes = [8, 32], strides = [1, 1]} : vector<32x32xf32> to vector<8x32xf32>
    %cst_44 = arith.constant dense<0.000000e+00> : vector<8x32xf32>
    %105 = tpu.matmul %103, %104, %cst_44 {dimension_numbers = #tpu.dot_dimension_numbers<[1], [0], [0], [1], [0, 0, 1, 1], [], []>} : vector<8x8xf32>, vector<8x32xf32>, vector<8x32xf32> -> vector<8x32xf32>
    %106 = arith.addf %87, %105 : vector<8x32xf32>
    %107 = vector.broadcast %11 : vector<1x32xf32> to vector<8x32xf32>
    %108 = arith.addf %106, %107 : vector<8x32xf32>
    %109 = arith.addf %20, %108 : vector<8x32xf32>
    %cst_45 = arith.constant dense<0.000000e+00> : vector<8xf32>
    %110 = vector.multi_reduction <add>, %109, %cst_45 [1] : vector<8x32xf32> to vector<8xf32>
    %111 = vector.shape_cast %110 : vector<8xf32> to vector<8x1xf32>
    %cst_46 = arith.constant 3.200000e+01 : f32
    %112 = vector.broadcast %cst_46 : f32 to vector<8x1xf32>
    %113 = arith.divf %111, %112 : vector<8x1xf32>
    %114 = vector.broadcast %113 : vector<8x1xf32> to vector<8x32xf32>
    %115 = arith.subf %109, %114 : vector<8x32xf32>
    %116 = arith.mulf %115, %115 : vector<8x32xf32>
    %cst_47 = arith.constant dense<0.000000e+00> : vector<8xf32>
    %117 = vector.multi_reduction <add>, %116, %cst_47 [1] : vector<8x32xf32> to vector<8xf32>
    %118 = vector.shape_cast %117 : vector<8xf32> to vector<8x1xf32>
    %cst_48 = arith.constant 3.200000e+01 : f32
    %119 = vector.broadcast %cst_48 : f32 to vector<8x1xf32>
    %120 = arith.divf %118, %119 : vector<8x1xf32>
    %cst_49 = arith.constant 9.99999974E-6 : f32
    %121 = vector.broadcast %cst_49 : f32 to vector<8x1xf32>
    %122 = arith.addf %120, %121 : vector<8x1xf32>
    %123 = math.rsqrt %122 : vector<8x1xf32>
    %124 = vector.broadcast %123 : vector<8x1xf32> to vector<8x32xf32>
    %125 = arith.mulf %115, %124 : vector<8x32xf32>
    %126 = vector.broadcast %14 : vector<1x32xf32> to vector<8x32xf32>
    %127 = arith.mulf %125, %126 : vector<8x32xf32>
    %128 = vector.broadcast %15 : vector<1x32xf32> to vector<8x32xf32>
    %129 = arith.addf %127, %128 : vector<8x32xf32>
    %cst_50 = arith.constant dense<0.000000e+00> : vector<8x32xf32>
    %130 = tpu.matmul %129, %5, %cst_50 {dimension_numbers = #tpu.dot_dimension_numbers<[1], [0], [0], [1], [0, 0, 1, 1], [], []>} : vector<8x32xf32>, vector<32x32xf32>, vector<8x32xf32> -> vector<8x32xf32>
    %131 = vector.broadcast %12 : vector<1x32xf32> to vector<8x32xf32>
    %132 = arith.addf %130, %131 : vector<8x32xf32>
    %cst_51 = arith.constant 0.000000e+00 : f32
    %133 = vector.broadcast %cst_51 : f32 to vector<8x32xf32>
    %134 = arith.maximumf %132, %133 : vector<8x32xf32>
    %cst_52 = arith.constant dense<0.000000e+00> : vector<8x32xf32>
    %135 = tpu.matmul %134, %6, %cst_52 {dimension_numbers = #tpu.dot_dimension_numbers<[1], [0], [0], [1], [0, 0, 1, 1], [], []>} : vector<8x32xf32>, vector<32x32xf32>, vector<8x32xf32> -> vector<8x32xf32>
    %136 = vector.broadcast %13 : vector<1x32xf32> to vector<8x32xf32>
    %137 = arith.addf %135, %136 : vector<8x32xf32>
    %138 = arith.addf %129, %137 : vector<8x32xf32>
    %cst_53 = arith.constant dense<0.000000e+00> : vector<8xf32>
    %139 = vector.multi_reduction <add>, %138, %cst_53 [1] : vector<8x32xf32> to vector<8xf32>
    %140 = vector.shape_cast %139 : vector<8xf32> to vector<8x1xf32>
    %cst_54 = arith.constant 3.200000e+01 : f32
    %141 = vector.broadcast %cst_54 : f32 to vector<8x1xf32>
    %142 = arith.divf %140, %141 : vector<8x1xf32>
    %143 = vector.broadcast %142 : vector<8x1xf32> to vector<8x32xf32>
    %144 = arith.subf %138, %143 : vector<8x32xf32>
    %145 = arith.mulf %144, %144 : vector<8x32xf32>
    %cst_55 = arith.constant dense<0.000000e+00> : vector<8xf32>
    %146 = vector.multi_reduction <add>, %145, %cst_55 [1] : vector<8x32xf32> to vector<8xf32>
    %147 = vector.shape_cast %146 : vector<8xf32> to vector<8x1xf32>
    %cst_56 = arith.constant 3.200000e+01 : f32
    %148 = vector.broadcast %cst_56 : f32 to vector<8x1xf32>
    %149 = arith.divf %147, %148 : vector<8x1xf32>
    %cst_57 = arith.constant 9.99999974E-6 : f32
    %150 = vector.broadcast %cst_57 : f32 to vector<8x1xf32>
    %151 = arith.addf %149, %150 : vector<8x1xf32>
    %152 = math.rsqrt %151 : vector<8x1xf32>
    %153 = vector.broadcast %152 : vector<8x1xf32> to vector<8x32xf32>
    %154 = arith.mulf %144, %153 : vector<8x32xf32>
    %155 = vector.broadcast %16 : vector<1x32xf32> to vector<8x32xf32>
    %156 = arith.mulf %154, %155 : vector<8x32xf32>
    %157 = vector.broadcast %17 : vector<1x32xf32> to vector<8x32xf32>
    %158 = arith.addf %156, %157 : vector<8x32xf32>
    %c0_58 = arith.constant 0 : index
    %c0_59 = arith.constant 0 : index
    %c0_60 = arith.constant 0 : index
    %159 = vector.load %arg10[%c0_58, %c0_59, %c0_60] : memref<1x8x32xf32, #tpu.memory_space<vmem>>, vector<1x8x32xf32>
    %160 = vector.shape_cast %159 : vector<1x8x32xf32> to vector<8x32xf32>
    %161 = vector.shape_cast %158 : vector<8x32xf32> to vector<1x8x32xf32>
    tpu.vector_store %arg10[%c0_58, %c0_59, %c0_60], %161 {strides = array<i32>} : memref<1x8x32xf32, #tpu.memory_space<vmem>>, vector<1x8x32xf32>,
    return
  }
  func.func @transform_0(%arg0: i32) -> (i32, i32, i32) {
    %c0_i32 = arith.constant 0 : i32
    %c0_i32_0 = arith.constant 0 : i32
    %c0_i32_1 = arith.constant 0 : i32
    return %arg0, %c0_i32, %c0_i32_0 : i32, i32, i32
  }
  func.func @transform_1(%arg0: i32) -> (i32, i32) {
    %c0_i32 = arith.constant 0 : i32
    %c0_i32_0 = arith.constant 0 : i32
    %c0_i32_1 = arith.constant 0 : i32
    return %c0_i32, %c0_i32_0 : i32, i32
  }
  func.func @transform_2(%arg0: i32) -> (i32, i32) {
    %c0_i32 = arith.constant 0 : i32
    %c0_i32_0 = arith.constant 0 : i32
    %c0_i32_1 = arith.constant 0 : i32
    return %c0_i32, %c0_i32_0 : i32, i32
  }
  func.func @transform_3(%arg0: i32) -> (i32, i32) {
    %c0_i32 = arith.constant 0 : i32
    %c0_i32_0 = arith.constant 0 : i32
    %c0_i32_1 = arith.constant 0 : i32
    return %c0_i32, %c0_i32_0 : i32, i32
  }
  func.func @transform_4(%arg0: i32) -> (i32, i32) {
    %c0_i32 = arith.constant 0 : i32
    %c0_i32_0 = arith.constant 0 : i32
    %c0_i32_1 = arith.constant 0 : i32
    return %c0_i32, %c0_i32_0 : i32, i32
  }
  func.func @transform_5(%arg0: i32) -> (i32, i32) {
    %c0_i32 = arith.constant 0 : i32
    %c0_i32_0 = arith.constant 0 : i32
    %c0_i32_1 = arith.constant 0 : i32
    return %c0_i32, %c0_i32_0 : i32, i32
  }
  func.func @transform_6(%arg0: i32) -> (i32, i32) {
    %c0_i32 = arith.constant 0 : i32
    %c0_i32_0 = arith.constant 0 : i32
    %c0_i32_1 = arith.constant 0 : i32
    return %c0_i32, %c0_i32_0 : i32, i32
  }
  func.func @transform_7(%arg0: i32) -> (i32, i32) {
    %c0_i32 = arith.constant 0 : i32
    %c0_i32_0 = arith.constant 0 : i32
    %c0_i32_1 = arith.constant 0 : i32
    return %c0_i32, %c0_i32_0 : i32, i32
  }
  func.func @transform_8(%arg0: i32) -> (i32, i32) {
    %c0_i32 = arith.constant 0 : i32
    %c0_i32_0 = arith.constant 0 : i32
    %c0_i32_1 = arith.constant 0 : i32
    return %c0_i32, %c0_i32_0 : i32, i32
  }
  func.func @transform_9(%arg0: i32) -> (i32, i32, i32) {
    %c0_i32 = arith.constant 0 : i32
    %c0_i32_0 = arith.constant 0 : i32
    %c0_i32_1 = arith.constant 0 : i32
    return %arg0, %c0_i32, %c0_i32_0 : i32, i32, i32
  }
}

</mosaic_0001>

<llo_original>
// kernel: tpu_custom_call.1
$region0: #{tpu_custom_call.1}
  #allocation0 [shape = 'u32[]', space=smem, size = 0x4, offset = 0x4, fixed_abs, tag = 'smem constant byte address 0x4 - core index']
  #allocation1 [shape = 'u32[72,128]{1,0:T(1,128)}', space=vmem, size = 0x9000, scoped, tag = 'internal scratch']
  %s0 = inlined_call_operand.hbm [shape: f32[2,8,32], index: 0, kind: input, shape index: {}]
  %s1 = inlined_call_operand.hbm [shape: f32[8,32], index: 1, kind: input, shape index: {}]
  %s2 = inlined_call_operand.hbm [shape: f32[32,32], index: 2, kind: input, shape index: {}]
  %s3 = inlined_call_operand.hbm [shape: f32[32,32], index: 3, kind: input, shape index: {}]
  %s4 = inlined_call_operand.hbm [shape: f32[32,32], index: 4, kind: input, shape index: {}]
  %s5 = inlined_call_operand.hbm [shape: f32[32,32], index: 5, kind: input, shape index: {}]
  %s6 = inlined_call_operand.hbm [shape: f32[32,32], index: 6, kind: input, shape index: {}]
  %s7 = inlined_call_operand.hbm [shape: f32[32,32], index: 7, kind: input, shape index: {}]
  %s8 = inlined_call_operand.hbm [shape: f32[10,32], index: 8, kind: input, shape index: {}]
  %s9 = inlined_call_operand.hbm [shape: f32[2,8,32], index: 9, kind: output, shape index: {}]
  %s10 = sld [smem:[#allocation0]]
  $region105: #{tpu_custom_call.1} parent=0
    _
  %s12 = ssub.s32 1, %s10
  %s13 = scalar_select 0, %s12, %s10
  $region1: #{tpu_custom_call.1} parent=0
    #allocation2 [shape = 'u8[8192]{0}', space=vmem, size = 0x2000, scoped, tag = 'input window, operand 0']
    #allocation3 [shape = 's32[2]{0}', space=sflag, size = 0x8, scoped, tag = 'scoped memory for tpu_custom_call.1']
    #allocation4 [shape = 's32[2]{0}', space=sflag, size = 0x8, scoped, tag = 'scoped memory for tpu_custom_call.1']
    #allocation5 [shape = 'u8[4096]{0}', space=vmem, size = 0x1000, scoped, tag = 'input window, operand 1, single buffered']
    #allocation6 [shape = 's32[1]{0}', space=sflag, size = 0x4, scoped, tag = 'scoped memory for tpu_custom_call.1']
    #allocation7 [shape = 'u8[16384]{0}', space=vmem, size = 0x4000, scoped, tag = 'input window, operand 2, single buffered']
    #allocation8 [shape = 'u8[16384]{0}', space=vmem, size = 0x4000, scoped, tag = 'input window, operand 3, single buffered']
    #allocation9 [shape = 's32[1]{0}', space=sflag, size = 0x4, scoped, tag = 'scoped memory for tpu_custom_call.1']
    #allocation10 [shape = 'u8[16384]{0}', space=vmem, size = 0x4000, scoped, tag = 'input window, operand 4, single buffered']
    #allocation11 [shape = 'u8[16384]{0}', space=vmem, size = 0x4000, scoped, tag = 'input window, operand 5, single buffered']
    #allocation12 [shape = 's32[1]{0}', space=sflag, size = 0x4, scoped, tag = 'scoped memory for tpu_custom_call.1']
    #allocation13 [shape = 'u8[16384]{0}', space=vmem, size = 0x4000, scoped, tag = 'input window, operand 6, single buffered']
    #allocation14 [shape = 'u8[16384]{0}', space=vmem, size = 0x4000, scoped, tag = 'input window, operand 7, single buffered']
    #allocation15 [shape = 's32[1]{0}', space=sflag, size = 0x4, scoped, tag = 'scoped memory for tpu_custom_call.1']
    #allocation16 [shape = 'u8[8192]{0}', space=vmem, size = 0x2000, scoped, tag = 'input window, operand 8, single buffered']
    #allocation17 [shape = 'u8[8192]{0}', space=vmem, size = 0x2000, scoped, tag = 'output window, operand 0']
    %14 = vsyncpa [#allocation3], 0
    %s15 = scalar_lea.sflag [#allocation3], 1
    %16 = vsyncpa %s15, 0
    %17 = vsyncpa [#allocation6], 0
    %18 = vsyncpa [#allocation9], 0
    %19 = vsyncpa [#allocation12], 0
    %20 = vsyncpa [#allocation15], 0
    %21 = vsyncpa [#allocation4], 0
    %s22 = scalar_lea.sflag [#allocation4], 1
    %23 = vsyncpa %s22, 0
    loop: start=0, step=1, limit=4
    $region2: #{tpu_custom_call.1} parent=1 // loop_pre_header
      _
    $region3: #{tpu_custom_call.1} parent=1 // loop_header
      %s25 = sphi 0, %s29
      %p26 = scmp.ge.s32.totalorder %s25, 4
      %s35 = sphi 0, %s37
      %s38 = sphi 0, %s35
      %s39 = sphi 0, %s38
      %s55 = sphi 0, %s39
      %s59 = sphi 0, %s59
      %s61 = sphi 0, %s59
      %s62 = sphi 0, %s61
      %s76 = sphi 0, %s62
      %s80 = sphi 0, %s80
      %s82 = sphi 0, %s80
      %s83 = sphi 0, %s82
      %s97 = sphi 0, %s83
      %s101 = sphi 0, %s101
      %s103 = sphi 0, %s101
      %s104 = sphi 0, %s103
      %s118 = sphi 0, %s104
      %s122 = sphi 0, %s122
      %s124 = sphi 0, %s122
      %s125 = sphi 0, %s124
      %s139 = sphi 0, %s125
      %s143 = sphi 0, %s143
      %s145 = sphi 0, %s143
      %s146 = sphi 0, %s145
      %s160 = sphi 0, %s146
      %s164 = sphi 0, %s164
      %s166 = sphi 0, %s164
      %s167 = sphi 0, %s166
      %s181 = sphi 0, %s167
      %s185 = sphi 0, %s185
      %s187 = sphi 0, %s185
      %s188 = sphi 0, %s187
      %s202 = sphi 0, %s188
      %s206 = sphi 0, %s206
      %s208 = sphi 0, %s206
      %s209 = sphi 0, %s208
      %s223 = sphi 0, %s209
      %s229 = sphi 0, %s231
      %s232 = sphi 0, %s229
      %s233 = sphi 0, %s232
      %s249 = sphi 0, %s233
    $region4: #{tpu_custom_call.1} parent=1 // loop_header_branch
      %28 = sbr.rel (%p26) target = $region8
    $region5: #{tpu_custom_call.1} parent=1 // loop_body
      %s30 = ssub.s32 %s25, 1
      %s31 = ssub.s32 %s25, 2
      %s32 = sadd.s32 %s25, 1
      %s33 = ssub.s32 %s25, %s32
      %p34 = scmp.eq.s32.totalorder %s33, 0
      %s36 = sadd.s32 %s35, 1
      %s37 = scalar_select %p34, %s35, %s36
      %p40 = pneg %p34
      %p41 = scmp.eq.s32.totalorder %s25, 1
      %p42 = por %p40, %p41
      %p43 = scmp.ne.s32.totalorder %s35, %s38
      %p44 = scmp.eq.s32.totalorder %s25, 0
      %p45 = por %p43, %p44
      %p46 = scmp.ne.s32.totalorder %s35, %s38
      %p47 = scmp.eq.s32.totalorder %s30, 1
      %p48 = por %p46, %p47
      %p49 = scmp.ne.s32.totalorder %s38, %s39
      %p50 = scmp.eq.s32.totalorder %s30, 0
      %p51 = por %p49, %p50
      %p52 = scmp.ne.s32.totalorder %s38, %s39
      %p53 = scmp.eq.s32.totalorder %s31, 1
      %p54 = por %p52, %p53
      %p56 = scmp.ne.s32.totalorder %s39, %s55
      %p57 = scmp.eq.s32.totalorder %s31, 0
      %p58 = por %p56, %p57
      %s60 = sadd.s32 %s59, 1
      %p63 = scmp.eq.s32.totalorder %s25, 1
      %p64 = scmp.ne.s32.totalorder %s59, %s61
      %p65 = scmp.eq.s32.totalorder %s25, 0
      %p66 = por %p64, %p65
      %p67 = scmp.ne.s32.totalorder %s59, %s61
      %p68 = scmp.eq.s32.totalorder %s30, 1
      %p69 = por %p67, %p68
      %p70 = scmp.ne.s32.totalorder %s61, %s62
      %p71 = scmp.eq.s32.totalorder %s30, 0
      %p72 = por %p70, %p71
      %p73 = scmp.ne.s32.totalorder %s61, %s62
      %p74 = scmp.eq.s32.totalorder %s31, 1
      %p75 = por %p73, %p74
      %p77 = scmp.ne.s32.totalorder %s62, %s76
      %p78 = scmp.eq.s32.totalorder %s31, 0
      %p79 = por %p77, %p78
      %s81 = sadd.s32 %s80, 1
      %p84 = scmp.eq.s32.totalorder %s25, 1
      %p85 = scmp.ne.s32.totalorder %s80, %s82
      %p86 = scmp.eq.s32.totalorder %s25, 0
      %p87 = por %p85, %p86
      %p88 = scmp.ne.s32.totalorder %s80, %s82
      %p89 = scmp.eq.s32.totalorder %s30, 1
      %p90 = por %p88, %p89
      %p91 = scmp.ne.s32.totalorder %s82, %s83
      %p92 = scmp.eq.s32.totalorder %s30, 0
      %p93 = por %p91, %p92
      %p94 = scmp.ne.s32.totalorder %s82, %s83
      %p95 = scmp.eq.s32.totalorder %s31, 1
      %p96 = por %p94, %p95
      %p98 = scmp.ne.s32.totalorder %s83, %s97
      %p99 = scmp.eq.s32.totalorder %s31, 0
      %p100 = por %p98, %p99
      %s102 = sadd.s32 %s101, 1
      %p105 = scmp.eq.s32.totalorder %s25, 1
      %p106 = scmp.ne.s32.totalorder %s101, %s103
      %p107 = scmp.eq.s32.totalorder %s25, 0
      %p108 = por %p106, %p107
      %p109 = scmp.ne.s32.totalorder %s101, %s103
      %p110 = scmp.eq.s32.totalorder %s30, 1
      %p111 = por %p109, %p110
      %p112 = scmp.ne.s32.totalorder %s103, %s104
      %p113 = scmp.eq.s32.totalorder %s30, 0
      %p114 = por %p112, %p113
      %p115 = scmp.ne.s32.totalorder %s103, %s104
      %p116 = scmp.eq.s32.totalorder %s31, 1
      %p117 = por %p115, %p116
      %p119 = scmp.ne.s32.totalorder %s104, %s118
      %p120 = scmp.eq.s32.totalorder %s31, 0
      %p121 = por %p119, %p120
      %s123 = sadd.s32 %s122, 1
      %p126 = scmp.eq.s32.totalorder %s25, 1
      %p127 = scmp.ne.s32.totalorder %s122, %s124
      %p128 = scmp.eq.s32.totalorder %s25, 0
      %p129 = por %p127, %p128
      %p130 = scmp.ne.s32.totalorder %s122, %s124
      %p131 = scmp.eq.s32.totalorder %s30, 1
      %p132 = por %p130, %p131
      %p133 = scmp.ne.s32.totalorder %s124, %s125
      %p134 = scmp.eq.s32.totalorder %s30, 0
      %p135 = por %p133, %p134
      %p136 = scmp.ne.s32.totalorder %s124, %s125
      %p137 = scmp.eq.s32.totalorder %s31, 1
      %p138 = por %p136, %p137
      %p140 = scmp.ne.s32.totalorder %s125, %s139
      %p141 = scmp.eq.s32.totalorder %s31, 0
      %p142 = por %p140, %p141
      %s144 = sadd.s32 %s143, 1
      %p147 = scmp.eq.s32.totalorder %s25, 1
      %p148 = scmp.ne.s32.totalorder %s143, %s145
      %p149 = scmp.eq.s32.totalorder %s25, 0
      %p150 = por %p148, %p149
      %p151 = scmp.ne.s32.totalorder %s143, %s145
      %p152 = scmp.eq.s32.totalorder %s30, 1
      %p153 = por %p151, %p152
      %p154 = scmp.ne.s32.totalorder %s145, %s146
      %p155 = scmp.eq.s32.totalorder %s30, 0
      %p156 = por %p154, %p155
      %p157 = scmp.ne.s32.totalorder %s145, %s146
      %p158 = scmp.eq.s32.totalorder %s31, 1
      %p159 = por %p157, %p158
      %p161 = scmp.ne.s32.totalorder %s146, %s160
      %p162 = scmp.eq.s32.totalorder %s31, 0
      %p163 = por %p161, %p162
      %s165 = sadd.s32 %s164, 1
      %p168 = scmp.eq.s32.totalorder %s25, 1
      %p169 = scmp.ne.s32.totalorder %s164, %s166
      %p170 = scmp.eq.s32.totalorder %s25, 0
      %p171 = por %p169, %p170
      %p172 = scmp.ne.s32.totalorder %s164, %s166
      %p173 = scmp.eq.s32.totalorder %s30, 1
      %p174 = por %p172, %p173
      %p175 = scmp.ne.s32.totalorder %s166, %s167
      %p176 = scmp.eq.s32.totalorder %s30, 0
      %p177 = por %p175, %p176
      %p178 = scmp.ne.s32.totalorder %s166, %s167
      %p179 = scmp.eq.s32.totalorder %s31, 1
      %p180 = por %p178, %p179
      %p182 = scmp.ne.s32.totalorder %s167, %s181
      %p183 = scmp.eq.s32.totalorder %s31, 0
      %p184 = por %p182, %p183
      %s186 = sadd.s32 %s185, 1
      %p189 = scmp.eq.s32.totalorder %s25, 1
      %p190 = scmp.ne.s32.totalorder %s185, %s187
      %p191 = scmp.eq.s32.totalorder %s25, 0
      %p192 = por %p190, %p191
      %p193 = scmp.ne.s32.totalorder %s185, %s187
      %p194 = scmp.eq.s32.totalorder %s30, 1
      %p195 = por %p193, %p194
      %p196 = scmp.ne.s32.totalorder %s187, %s188
      %p197 = scmp.eq.s32.totalorder %s30, 0
      %p198 = por %p196, %p197
      %p199 = scmp.ne.s32.totalorder %s187, %s188
      %p200 = scmp.eq.s32.totalorder %s31, 1
      %p201 = por %p199, %p200
      %p203 = scmp.ne.s32.totalorder %s188, %s202
      %p204 = scmp.eq.s32.totalorder %s31, 0
      %p205 = por %p203, %p204
      %s207 = sadd.s32 %s206, 1
      %p210 = scmp.eq.s32.totalorder %s25, 1
      %p211 = scmp.ne.s32.totalorder %s206, %s208
      %p212 = scmp.eq.s32.totalorder %s25, 0
      %p213 = por %p211, %p212
      %p214 = scmp.ne.s32.totalorder %s206, %s208
      %p215 = scmp.eq.s32.totalorder %s30, 1
      %p216 = por %p214, %p215
      %p217 = scmp.ne.s32.totalorder %s208, %s209
      %p218 = scmp.eq.s32.totalorder %s30, 0
      %p219 = por %p217, %p218
      %p220 = scmp.ne.s32.totalorder %s208, %s209
      %p221 = scmp.eq.s32.totalorder %s31, 1
      %p222 = por %p220, %p221
      %p224 = scmp.ne.s32.totalorder %s209, %s223
      %p225 = scmp.eq.s32.totalorder %s31, 0
      %p226 = por %p224, %p225
      %s227 = ssub.s32 %s25, %s32
      %p228 = scmp.eq.s32.totalorder %s227, 0
      %s230 = sadd.s32 %s229, 1
      %s231 = scalar_select %p228, %s229, %s230
      %p234 = pneg %p228
      %p235 = scmp.eq.s32.totalorder %s25, 1
      %p236 = por %p234, %p235
      %p237 = scmp.ne.s32.totalorder %s229, %s232
      %p238 = scmp.eq.s32.totalorder %s25, 0
      %p239 = por %p237, %p238
      %p240 = scmp.ne.s32.totalorder %s229, %s232
      %p241 = scmp.eq.s32.totalorder %s30, 1
      %p242 = por %p240, %p241
      %p243 = scmp.ne.s32.totalorder %s232, %s233
      %p244 = scmp.eq.s32.totalorder %s30, 0
      %p245 = por %p243, %p244
      %p246 = scmp.ne.s32.totalorder %s232, %s233
      %p247 = scmp.eq.s32.totalorder %s31, 1
      %p248 = por %p246, %p247
      %p250 = scmp.ne.s32.totalorder %s233, %s249
      %p251 = scmp.eq.s32.totalorder %s31, 0
      %p252 = por %p250, %p251
      %p253 = scmp.le.s32.totalorder 1, %s25
      %p254 = scmp.lt.s32.totalorder %s25, 3
      %p255 = pnand %p253, %p254
      %p256 = pneg %p255
      // Predicated region
      $region9: #{tpu_custom_call.1} parent=5 // pred_check
        _
      $region10: #{tpu_custom_call.1} parent=5 // pred_check_branch
        %258 = sbr.rel (%p255) target = $region12
      $region11: #{tpu_custom_call.1} parent=5 // pred_region
        %s259 = ssub.s32 %s25, 1
        // Predicated region
        $region13: #{tpu_custom_call.1} parent=11 // pred_check
          %p260 = pneg %p72
        $region14: #{tpu_custom_call.1} parent=11 // pred_check_branch
          %262 = sbr.rel (%p260) target = $region16
        $region15: #{tpu_custom_call.1} parent=11 // pred_region
          %264 = vsyncadd [#allocation6], 0
          %s266 = sshll.u32 %s1, 4
          %s267 = int_to_ptr.hbm [resolvable:$true] %s266
          %s268 = sshll.u32 [#allocation5], 4
          %s269 = int_to_ptr.vmem [resolvable:$true] %s268
          %271 = dma.hbm_to_vmem [thread:$0]  %s267, 128, %s269, [#allocation6]
        $region16: #{tpu_custom_call.1} parent=11 // pred_fallthru
          _
        // Predicated region
        $region17: #{tpu_custom_call.1} parent=11 // pred_check
          %p272 = pneg %p93
        $region18: #{tpu_custom_call.1} parent=11 // pred_check_branch
          %274 = sbr.rel (%p272) target = $region20
        $region19: #{tpu_custom_call.1} parent=11 // pred_region
          %276 = vsyncadd [#allocation6], 0
          %s277 = sshll.u32 %s2, 4
          %s278 = int_to_ptr.hbm [resolvable:$true] %s277
          %s279 = sshll.u32 [#allocation7], 4
          %s280 = int_to_ptr.vmem [resolvable:$true] %s279
          %285 = dma.hbm_to_vmem [thread:$0]  %s278, 512, %s280, [#allocation6], 128, 128, 8
        $region20: #{tpu_custom_call.1} parent=11 // pred_fallthru
          _
        // Predicated region
        $region21: #{tpu_custom_call.1} parent=11 // pred_check
          %p286 = pneg %p114
        $region22: #{tpu_custom_call.1} parent=11 // pred_check_branch
          %288 = sbr.rel (%p286) target = $region24
        $region23: #{tpu_custom_call.1} parent=11 // pred_region
          %290 = vsyncadd [#allocation9], 0
          %s291 = sshll.u32 %s3, 4
          %s292 = int_to_ptr.hbm [resolvable:$true] %s291
          %s293 = sshll.u32 [#allocation8], 4
          %s294 = int_to_ptr.vmem [resolvable:$true] %s293
          %299 = dma.hbm_to_vmem [thread:$0]  %s292, 512, %s294, [#allocation9], 128, 128, 8
        $region24: #{tpu_custom_call.1} parent=11 // pred_fallthru
          _
        // Predicated region
        $region25: #{tpu_custom_call.1} parent=11 // pred_check
          %p300 = pneg %p135
        $region26: #{tpu_custom_call.1} parent=11 // pred_check_branch
          %302 = sbr.rel (%p300) target = $region28
        $region27: #{tpu_custom_call.1} parent=11 // pred_region
          %304 = vsyncadd [#allocation9], 0
          %s305 = sshll.u32 %s4, 4
          %s306 = int_to_ptr.hbm [resolvable:$true] %s305
          %s307 = sshll.u32 [#allocation10], 4
          %s308 = int_to_ptr.vmem [resolvable:$true] %s307
          %313 = dma.hbm_to_vmem [thread:$0]  %s306, 512, %s308, [#allocation9], 128, 128, 8
        $region28: #{tpu_custom_call.1} parent=11 // pred_fallthru
          _
        // Predicated region
        $region29: #{tpu_custom_call.1} parent=11 // pred_check
          %p314 = pneg %p156
        $region30: #{tpu_custom_call.1} parent=11 // pred_check_branch
          %316 = sbr.rel (%p314) target = $region32
        $region31: #{tpu_custom_call.1} parent=11 // pred_region
          %318 = vsyncadd [#allocation12], 0
          %s319 = sshll.u32 %s5, 4
          %s320 = int_to_ptr.hbm [resolvable:$true] %s319
          %s321 = sshll.u32 [#allocation11], 4
          %s322 = int_to_ptr.vmem [resolvable:$true] %s321
          %327 = dma.hbm_to_vmem [thread:$0]  %s320, 512, %s322, [#allocation12], 128, 128, 8
        $region32: #{tpu_custom_call.1} parent=11 // pred_fallthru
          _
        // Predicated region
        $region33: #{tpu_custom_call.1} parent=11 // pred_check
          %p328 = pneg %p177
        $region34: #{tpu_custom_call.1} parent=11 // pred_check_branch
          %330 = sbr.rel (%p328) target = $region36
        $region35: #{tpu_custom_call.1} parent=11 // pred_region
          %332 = vsyncadd [#allocation12], 0
          %s333 = sshll.u32 %s6, 4
          %s334 = int_to_ptr.hbm [resolvable:$true] %s333
          %s335 = sshll.u32 [#allocation13], 4
          %s336 = int_to_ptr.vmem [resolvable:$true] %s335
          %341 = dma.hbm_to_vmem [thread:$0]  %s334, 512, %s336, [#allocation12], 128, 128, 8
        $region36: #{tpu_custom_call.1} parent=11 // pred_fallthru
          _
        // Predicated region
        $region37: #{tpu_custom_call.1} parent=11 // pred_check
          %p342 = pneg %p198
        $region38: #{tpu_custom_call.1} parent=11 // pred_check_branch
          %344 = sbr.rel (%p342) target = $region40
        $region39: #{tpu_custom_call.1} parent=11 // pred_region
          %346 = vsyncadd [#allocation15], 0
          %s347 = sshll.u32 %s7, 4
          %s348 = int_to_ptr.hbm [resolvable:$true] %s347
          %s349 = sshll.u32 [#allocation14], 4
          %s350 = int_to_ptr.vmem [resolvable:$true] %s349
          %355 = dma.hbm_to_vmem [thread:$0]  %s348, 512, %s350, [#allocation15], 128, 128, 8
        $region40: #{tpu_custom_call.1} parent=11 // pred_fallthru
          _
        // Predicated region
        $region41: #{tpu_custom_call.1} parent=11 // pred_check
          %p356 = pneg %p219
        $region42: #{tpu_custom_call.1} parent=11 // pred_check_branch
          %358 = sbr.rel (%p356) target = $region44
        $region43: #{tpu_custom_call.1} parent=11 // pred_region
          %360 = vsyncadd [#allocation15], 0
          %s361 = sshll.u32 %s8, 4
          %s362 = int_to_ptr.hbm [resolvable:$true] %s361
          %s363 = sshll.u32 [#allocation16], 4
          %s364 = int_to_ptr.vmem [resolvable:$true] %s363
          %369 = dma.hbm_to_vmem [thread:$0]  %s362, 256, %s364, [#allocation15], 128, 128, 8
        $region44: #{tpu_custom_call.1} parent=11 // pred_fallthru
          _
      $region12: #{tpu_custom_call.1} parent=5 // pred_fallthru
        _
      %p370 = scmp.lt.s32.totalorder %s25, 2
      // Predicated region
      $region45: #{tpu_custom_call.1} parent=5 // pred_check
        %p371 = pneg %p370
      $region46: #{tpu_custom_call.1} parent=5 // pred_check_branch
        %373 = sbr.rel (%p371) target = $region48
      $region47: #{tpu_custom_call.1} parent=5 // pred_region
        // Predicated region
        $region49: #{tpu_custom_call.1} parent=47 // pred_check
          %p374 = pneg %p45
        $region50: #{tpu_custom_call.1} parent=47 // pred_check_branch
          %376 = sbr.rel (%p374) target = $region52
        $region51: #{tpu_custom_call.1} parent=47 // pred_region
          %s377 = sand.u32 %s35, 1
          %s378 = scalar_lea.sflag [#allocation3], %s377
          %s379 = sand.u32 %s35, 1
          %s380 = smul.addr %s379, 8
          %s381 = scalar_lea.vmem [#allocation2], %s380
          %383 = vsyncadd %s378, 0
          %s384 = smul.addr %s25, 8
          %s385 = scalar_lea.hbm %s0, %s384
          %s387 = sshll.u32 %s385, 4
          %s388 = int_to_ptr.hbm [resolvable:$true] %s387
          %s389 = sshll.u32 %s381, 4
          %s390 = int_to_ptr.vmem [resolvable:$true] %s389
          %392 = dma.hbm_to_vmem [thread:$0]  %s388, 128, %s390, %s378
        $region52: #{tpu_custom_call.1} parent=47 // pred_fallthru
          _
      $region48: #{tpu_custom_call.1} parent=5 // pred_fallthru
        _
      %p393 = scmp.le.s32.totalorder 1, %s25
      %p394 = scmp.lt.s32.totalorder %s25, 3
      %p395 = pnand %p393, %p394
      %p396 = pneg %p395
      // Predicated region
      $region53: #{tpu_custom_call.1} parent=5 // pred_check
        _
      $region54: #{tpu_custom_call.1} parent=5 // pred_check_branch
        %398 = sbr.rel (%p395) target = $region56
      $region55: #{tpu_custom_call.1} parent=5 // pred_region
        %s399 = ssub.s32 %s25, 1
        %s400 = sand.u32 %s38, 1
        %s401 = scalar_lea.sflag [#allocation3], %s400
        %s402 = sand.u32 %s38, 1
        %s403 = smul.addr %s402, 8
        %s404 = scalar_lea.vmem [#allocation2], %s403
        // Predicated region
        $region57: #{tpu_custom_call.1} parent=55 // pred_check
          %p405 = pneg %p51
        $region58: #{tpu_custom_call.1} parent=55 // pred_check_branch
          %407 = sbr.rel (%p405) target = $region60
        $region59: #{tpu_custom_call.1} parent=55 // pred_region
          %409 = dma.done %s401, 128
        $region60: #{tpu_custom_call.1} parent=55 // pred_fallthru
          _
        // Predicated region
        $region61: #{tpu_custom_call.1} parent=55 // pred_check
          %p410 = pneg %p72
        $region62: #{tpu_custom_call.1} parent=55 // pred_check_branch
          %412 = sbr.rel (%p410) target = $region64
        $region63: #{tpu_custom_call.1} parent=55 // pred_region
          %414 = dma.done [#allocation6], 128
        $region64: #{tpu_custom_call.1} parent=55 // pred_fallthru
          _
        // Predicated region
        $region65: #{tpu_custom_call.1} parent=55 // pred_check
          %p415 = pneg %p93
        $region66: #{tpu_custom_call.1} parent=55 // pred_check_branch
          %417 = sbr.rel (%p415) target = $region68
        $region67: #{tpu_custom_call.1} parent=55 // pred_region
          %419 = dma.done [#allocation6], 512
        $region68: #{tpu_custom_call.1} parent=55 // pred_fallthru
          _
        // Predicated region
        $region69: #{tpu_custom_call.1} parent=55 // pred_check
          %p420 = pneg %p114
        $region70: #{tpu_custom_call.1} parent=55 // pred_check_branch
          %422 = sbr.rel (%p420) target = $region72
        $region71: #{tpu_custom_call.1} parent=55 // pred_region
          %424 = dma.done [#allocation9], 512
        $region72: #{tpu_custom_call.1} parent=55 // pred_fallthru
          _
        // Predicated region
        $region73: #{tpu_custom_call.1} parent=55 // pred_check
          %p425 = pneg %p135
        $region74: #{tpu_custom_call.1} parent=55 // pred_check_branch
          %427 = sbr.rel (%p425) target = $region76
        $region75: #{tpu_custom_call.1} parent=55 // pred_region
          %429 = dma.done [#allocation9], 512
        $region76: #{tpu_custom_call.1} parent=55 // pred_fallthru
          _
        // Predicated region
        $region77: #{tpu_custom_call.1} parent=55 // pred_check
          %p430 = pneg %p156
        $region78: #{tpu_custom_call.1} parent=55 // pred_check_branch
          %432 = sbr.rel (%p430) target = $region80
        $region79: #{tpu_custom_call.1} parent=55 // pred_region
          %434 = dma.done [#allocation12], 512
        $region80: #{tpu_custom_call.1} parent=55 // pred_fallthru
          _
        // Predicated region
        $region81: #{tpu_custom_call.1} parent=55 // pred_check
          %p435 = pneg %p177
        $region82: #{tpu_custom_call.1} parent=55 // pred_check_branch
          %437 = sbr.rel (%p435) target = $region84
        $region83: #{tpu_custom_call.1} parent=55 // pred_region
          %439 = dma.done [#allocation12], 512
        $region84: #{tpu_custom_call.1} parent=55 // pred_fallthru
          _
        // Predicated region
        $region85: #{tpu_custom_call.1} parent=55 // pred_check
          %p440 = pneg %p198
        $region86: #{tpu_custom_call.1} parent=55 // pred_check_branch
          %442 = sbr.rel (%p440) target = $region88
        $region87: #{tpu_custom_call.1} parent=55 // pred_region
          %444 = dma.done [#allocation15], 512
        $region88: #{tpu_custom_call.1} parent=55 // pred_fallthru
          _
        // Predicated region
        $region89: #{tpu_custom_call.1} parent=55 // pred_check
          %p445 = pneg %p219
        $region90: #{tpu_custom_call.1} parent=55 // pred_check_branch
          %447 = sbr.rel (%p445) target = $region92
        $region91: #{tpu_custom_call.1} parent=55 // pred_region
          %449 = dma.done [#allocation15], 256
        $region92: #{tpu_custom_call.1} parent=55 // pred_fallthru
          _
        %s450 = sand.u32 %s38, 1
        %s451 = scalar_lea.sflag [#allocation3], %s450
        %s452 = sand.u32 %s38, 1
        %s453 = smul.addr %s452, 8
        %s454 = scalar_lea.vmem [#allocation2], %s453
        %p455 = pneg %p51
        %p456 = pneg %p48
        %p457 = pneg %p72
        %p458 = pneg %p69
        %p459 = pneg %p93
        %p460 = pneg %p90
        %p461 = pneg %p114
        %p462 = pneg %p111
        %p463 = pneg %p135
        %p464 = pneg %p132
        %p465 = pneg %p156
        %p466 = pneg %p153
        %p467 = pneg %p177
        %p468 = pneg %p174
        %p469 = pneg %p198
        %p470 = pneg %p195
        %p471 = pneg %p219
        %p472 = pneg %p216
        %p473 = pneg %p245
        %p474 = pneg %p242
        %s475 = sand.u32 %s232, 1
        %s476 = scalar_lea.sflag [#allocation4], %s475
        %s477 = sand.u32 %s232, 1
        %s478 = smul.addr %s477, 8
        %s479 = scalar_lea.vmem [#allocation17], %s478
        %v480 = vld [vmem:[#allocation5] sm:$0xff]
        %v481 = vld [vmem:[#allocation7] sm:$0xff]
        %v482 = vld [vmem:[#allocation7 + $0x8] sm:$0xff]
        %v483 = vld [vmem:[#allocation7 + $0x10] sm:$0xff]
        %v484 = vld [vmem:[#allocation7 + $0x18] sm:$0xff]
        %v485 = vld [vmem:[#allocation8] sm:$0xff]
        %v486 = vld [vmem:[#allocation8 + $0x8] sm:$0xff]
        %v487 = vld [vmem:[#allocation8 + $0x10] sm:$0xff]
        %v488 = vld [vmem:[#allocation8 + $0x18] sm:$0xff]
        %v489 = vld [vmem:[#allocation10] sm:$0xff]
        %v490 = vld [vmem:[#allocation10 + $0x8] sm:$0xff]
        %v491 = vld [vmem:[#allocation10 + $0x10] sm:$0xff]
        %v492 = vld [vmem:[#allocation10 + $0x18] sm:$0xff]
        %v493 = vld [vmem:[#allocation11] sm:$0xff]
        %v494 = vld [vmem:[#allocation11 + $0x8] sm:$0xff]
        %v495 = vld [vmem:[#allocation11 + $0x10] sm:$0xff]
        %v496 = vld [vmem:[#allocation11 + $0x18] sm:$0xff]
        %v497 = vld [vmem:[#allocation13] sm:$0xff]
        %v498 = vld [vmem:[#allocation13 + $0x8] sm:$0xff]
        %v499 = vld [vmem:[#allocation13 + $0x10] sm:$0xff]
        %v500 = vld [vmem:[#allocation13 + $0x18] sm:$0xff]
        %v501 = vld [vmem:[#allocation14] sm:$0xff]
        %v502 = vld [vmem:[#allocation14 + $0x8] sm:$0xff]
        %v503 = vld [vmem:[#allocation14 + $0x10] sm:$0xff]
        %v504 = vld [vmem:[#allocation14 + $0x18] sm:$0xff]
        %v505 = vld [vmem:[#allocation16] sm:$0xff]
        %v506 = vld [vmem:[#allocation16 + $0x8] sm:$0x3]
        %v507 = vld [vmem:[%s404] sm:$0xff]
        %v508 = vadd.f32 %v507, %v480
        %v509 = vperm.slane %v505, 0
        %vm510 = vcmask 261120
        %v512 = vsel %vm510, %v508, 0
        %514 = vmatpush.msra.mxu0 0.0
        %515 = vmatpush.msra.mxu0 0.0
        %516 = vmatpush.msra.mxu0 0.0
        %517 = vmatpush.msra.mxu0 0.0
        %518 = vmatpush.msra.mxu0 0.0
        %519 = vmatpush.msra.mxu0 0.0
        %520 = vmatpush.msra.mxu0 0.0
        %521 = vmatpush.msra.mxu0 0.0
        %522 = vmatpush.msra.mxu0 0.0
        %523 = vmatpush.msra.mxu0 0.0
        %524 = vmatpush.msra.mxu0 0.0
        %525 = vmatpush.msra.mxu0 0.0
        %526 = vmatpush.msra.mxu0 %v484
        %527 = vmatpush.msra.mxu0 %v483
        %528 = vmatpush.msra.mxu0 %v482
        %529 = vmatpush.msra.mxu0 %v481
        %530 = vmatmul.f32.gmra.mxu0 %v512
        %v531 = vpop.f32.mrf.mxu0
        %v532 = vadd.f32 %v509, %v531
        %533 = vdwg.mxu0
        %v534 = vperm.slane %v505, 1
        %535 = vmatpush.msra.mxu0 0.0
        %536 = vmatpush.msra.mxu0 0.0
        %537 = vmatpush.msra.mxu0 0.0
        %538 = vmatpush.msra.mxu0 0.0
        %539 = vmatpush.msra.mxu0 0.0
        %540 = vmatpush.msra.mxu0 0.0
        %541 = vmatpush.msra.mxu0 0.0
        %542 = vmatpush.msra.mxu0 0.0
        %543 = vmatpush.msra.mxu0 0.0
        %544 = vmatpush.msra.mxu0 0.0
        %545 = vmatpush.msra.mxu0 0.0
        %546 = vmatpush.msra.mxu0 0.0
        %547 = vmatpush.msra.mxu0 %v488
        %548 = vmatpush.msra.mxu0 %v487
        %549 = vmatpush.msra.mxu0 %v486
        %550 = vmatpush.msra.mxu0 %v485
        %551 = vmatmul.f32.gmra.mxu0 %v512
        %v552 = vpop.f32.mrf.mxu0
        %v553 = vadd.f32 %v534, %v552
        %554 = vdwg.mxu0
        %v555 = vperm.slane %v505, 2
        %556 = vmatpush.msra.mxu0 0.0
        %557 = vmatpush.msra.mxu0 0.0
        %558 = vmatpush.msra.mxu0 0.0
        %559 = vmatpush.msra.mxu0 0.0
        %560 = vmatpush.msra.mxu0 0.0
        %561 = vmatpush.msra.mxu0 0.0
        %562 = vmatpush.msra.mxu0 0.0
        %563 = vmatpush.msra.mxu0 0.0
        %564 = vmatpush.msra.mxu0 0.0
        %565 = vmatpush.msra.mxu0 0.0
        %566 = vmatpush.msra.mxu0 0.0
        %567 = vmatpush.msra.mxu0 0.0
        %568 = vmatpush.msra.mxu0 %v492
        %569 = vmatpush.msra.mxu0 %v491
        %570 = vmatpush.msra.mxu0 %v490
        %571 = vmatpush.msra.mxu0 %v489
        %572 = vmatmul.f32.gmra.mxu0 %v512
        %v573 = vpop.f32.mrf.mxu0
        %v574 = vadd.f32 %v555, %v573
        %575 = vdwg.mxu0
        %vm576 = vcmask 64512
        %v578 = vsel %vm576, %v532, 0
        %v581 = vsel %vm576, %v553, 0
        %583 = vmatpush.xpose.msra.mxu0 0.0
        %584 = vmatpush.xpose.msra.mxu0 0.0
        %585 = vmatpush.xpose.msra.mxu0 0.0
        %586 = vmatpush.xpose.msra.mxu0 0.0
        %587 = vmatpush.xpose.msra.mxu0 0.0
        %588 = vmatpush.xpose.msra.mxu0 0.0
        %589 = vmatpush.xpose.msra.mxu0 0.0
        %590 = vmatpush.xpose.msra.mxu0 0.0
        %591 = vmatpush.xpose.msra.mxu0 0.0
        %592 = vmatpush.xpose.msra.mxu0 0.0
        %593 = vmatpush.xpose.msra.mxu0 0.0
        %594 = vmatpush.xpose.msra.mxu0 0.0
        %595 = vmatpush.xpose.msra.mxu0 0.0
        %596 = vmatpush.xpose.msra.mxu0 0.0
        %597 = vmatpush.xpose.msra.mxu0 0.0
        %598 = vmatpush.xpose.msra.mxu0 %v581
        %599 = vmatmul.f32.gmra.mxu0 %v578
        %v600 = vpop.f32.mrf.mxu0
        %v601 = vadd.f32 0.0, %v600
        %602 = vdwg.mxu0
        %v603 = vmul.f32 %v601, 0.35355338
        %v604 = vsel %vm576, %v603, -inf
        %605 = vmax.xlane.f32.xlu0 %v604
        %v606 = vpop.xlane.xlu0 %605
        %v607 = vsub.f32 %v603, %v606
        %v608 = vmul.f32 %v607, 1.442695
        %v609 = vpow.pop %v608
        %v610 = vsel %vm576, %v609, 0.0
        %611 = vadd.xlane.f32.xlu0 %v610
        %v612 = vpop.xlane.xlu0 %611
        %v613 = vrcp.pop %v612
        %v614 = vmul.f32 %v612, %v613
        %v615 = vsub.f32 1.0, %v614
        %v616 = vmul.f32 %v613, %v615
        %v617 = vadd.f32 %v613, %v616
        %vm618 = vweird.f32 %v612
        %vm619 = vweird.f32 %v613
        %vm620 = vmor %vm618, %vm619
        %v621 = vsel %vm620, %v613, %v617
        %v622 = vand.u32 2147483647, %v612
        %vm623 = vcmp.eq.f32.partialorder %v622, 8.507059e+37
        %v624 = vand.u32 %v612, 2147483648
        %v625 = vor.u32 1.1754944e-38, %v624
        %v626 = vsel %vm623, %v625, %v621
        %v627 = vmul.f32 %v609, %v626
        %v629 = vsel %vm576, %v627, 0
        %631 = vmatpush.msra.mxu0 0.0
        %632 = vmatpush.msra.mxu0 0.0
        %633 = vmatpush.msra.mxu0 0.0
        %634 = vmatpush.msra.mxu0 0.0
        %635 = vmatpush.msra.mxu0 0.0
        %636 = vmatpush.msra.mxu0 0.0
        %637 = vmatpush.msra.mxu0 0.0
        %638 = vmatpush.msra.mxu0 0.0
        %639 = vmatpush.msra.mxu0 0.0
        %640 = vmatpush.msra.mxu0 0.0
        %641 = vmatpush.msra.mxu0 0.0
        %642 = vmatpush.msra.mxu0 0.0
        %643 = vmatpush.msra.mxu0 0.0
        %644 = vmatpush.msra.mxu0 0.0
        %645 = vmatpush.msra.mxu0 0.0
        %646 = vmatpush.msra.mxu0 %v574
        %647 = vmatmul.f32.gmra.mxu0 %v629
        %v648 = vpop.f32.mrf.mxu0
        %v649 = vadd.f32 0.0, %v648
        %650 = vdwg.mxu0
        %651 = vrot.lane.b32.xlu0 %v532, 120
        %v652 = vpop.permute.xlu0 %651
        %653 = vrot.lane.b32.xlu0 %v553, 120
        %v654 = vpop.permute.xlu0 %653
        %v655 = vsel %vm576, %v652, 0
        %v657 = vsel %vm576, %v654, 0
        %659 = vmatpush.xpose.msra.mxu0 0.0
        %660 = vmatpush.xpose.msra.mxu0 0.0
        %661 = vmatpush.xpose.msra.mxu0 0.0
        %662 = vmatpush.xpose.msra.mxu0 0.0
        %663 = vmatpush.xpose.msra.mxu0 0.0
        %664 = vmatpush.xpose.msra.mxu0 0.0
        %665 = vmatpush.xpose.msra.mxu0 0.0
        %666 = vmatpush.xpose.msra.mxu0 0.0
        %667 = vmatpush.xpose.msra.mxu0 0.0
        %668 = vmatpush.xpose.msra.mxu0 0.0
        %669 = vmatpush.xpose.msra.mxu0 0.0
        %670 = vmatpush.xpose.msra.mxu0 0.0
        %671 = vmatpush.xpose.msra.mxu0 0.0
        %672 = vmatpush.xpose.msra.mxu0 0.0
        %673 = vmatpush.xpose.msra.mxu0 0.0
        %674 = vmatpush.xpose.msra.mxu0 %v657
        %675 = vmatmul.f32.gmra.mxu0 %v655
        %v676 = vpop.f32.mrf.mxu0
        %v677 = vadd.f32 0.0, %v676
        %678 = vdwg.mxu0
        %v679 = vmul.f32 %v677, 0.35355338
        %v680 = vsel %vm576, %v679, -inf
        %681 = vmax.xlane.f32.xlu0 %v680
        %v682 = vpop.xlane.xlu0 %681
        %v683 = vsub.f32 %v679, %v682
        %v684 = vmul.f32 %v683, 1.442695
        %v685 = vpow.pop %v684
        %v686 = vsel %vm576, %v685, 0.0
        %687 = vadd.xlane.f32.xlu0 %v686
        %v688 = vpop.xlane.xlu0 %687
        %v689 = vrcp.pop %v688
        %v690 = vmul.f32 %v688, %v689
        %v691 = vsub.f32 1.0, %v690
        %v692 = vmul.f32 %v689, %v691
        %v693 = vadd.f32 %v689, %v692
        %vm694 = vweird.f32 %v688
        %vm695 = vweird.f32 %v689
        %vm696 = vmor %vm694, %vm695
        %v697 = vsel %vm696, %v689, %v693
        %v698 = vand.u32 2147483647, %v688
        %vm699 = vcmp.eq.f32.partialorder %v698, 8.507059e+37
        %v700 = vand.u32 %v688, 2147483648
        %v701 = vor.u32 1.1754944e-38, %v700
        %v702 = vsel %vm699, %v701, %v697
        %v703 = vmul.f32 %v685, %v702
        %705 = vrot.lane.b32.xlu0 %v574, 120
        %v706 = vpop.permute.xlu0 %705
        %v709 = vsel %vm576, %v703, 0
        %711 = vmatpush.msra.mxu0 0.0
        %712 = vmatpush.msra.mxu0 0.0
        %713 = vmatpush.msra.mxu0 0.0
        %714 = vmatpush.msra.mxu0 0.0
        %715 = vmatpush.msra.mxu0 0.0
        %716 = vmatpush.msra.mxu0 0.0
        %717 = vmatpush.msra.mxu0 0.0
        %718 = vmatpush.msra.mxu0 0.0
        %719 = vmatpush.msra.mxu0 0.0
        %720 = vmatpush.msra.mxu0 0.0
        %721 = vmatpush.msra.mxu0 0.0
        %722 = vmatpush.msra.mxu0 0.0
        %723 = vmatpush.msra.mxu0 0.0
        %724 = vmatpush.msra.mxu0 0.0
        %725 = vmatpush.msra.mxu0 0.0
        %726 = vmatpush.msra.mxu0 %v706
        %727 = vmatmul.f32.gmra.mxu0 %v709
        %v728 = vpop.f32.mrf.mxu0
        %v729 = vadd.f32 0.0, %v728
        %730 = vdwg.mxu0
        %v732 = vsel %vm576, %v729, 0
        %734 = vmatpush.msra.mxu0 0.0
        %735 = vmatpush.msra.mxu0 0.0
        %736 = vmatpush.msra.mxu0 0.0
        %737 = vmatpush.msra.mxu0 0.0
        %738 = vmatpush.msra.mxu0 0.0
        %739 = vmatpush.msra.mxu0 0.0
        %740 = vmatpush.msra.mxu0 0.0
        %741 = vmatpush.msra.mxu0 0.0
        %742 = vmatpush.msra.mxu0 0.0
        %743 = vmatpush.msra.mxu0 0.0
        %744 = vmatpush.msra.mxu0 0.0
        %745 = vmatpush.msra.mxu0 0.0
        %746 = vmatpush.msra.mxu0 0.0
        %747 = vmatpush.msra.mxu0 0.0
        %748 = vmatpush.msra.mxu0 0.0
        %749 = vmatpush.msra.mxu0 %v494
        %750 = vmatmul.f32.gmra.mxu0 %v732
        %v751 = vpop.f32.mrf.mxu0
        %v752 = vadd.f32 0.0, %v751
        %753 = vdwg.mxu0
        %v755 = vsel %vm576, %v649, 0
        %757 = vmatpush.msra.mxu0 0.0
        %758 = vmatpush.msra.mxu0 0.0
        %759 = vmatpush.msra.mxu0 0.0
        %760 = vmatpush.msra.mxu0 0.0
        %761 = vmatpush.msra.mxu0 0.0
        %762 = vmatpush.msra.mxu0 0.0
        %763 = vmatpush.msra.mxu0 0.0
        %764 = vmatpush.msra.mxu0 0.0
        %765 = vmatpush.msra.mxu0 0.0
        %766 = vmatpush.msra.mxu0 0.0
        %767 = vmatpush.msra.mxu0 0.0
        %768 = vmatpush.msra.mxu0 0.0
        %769 = vmatpush.msra.mxu0 0.0
        %770 = vmatpush.msra.mxu0 0.0
        %771 = vmatpush.msra.mxu0 0.0
        %772 = vmatpush.msra.mxu0 %v493
        %773 = vmatmul.f32.gmra.mxu0 %v755
        %v774 = vpop.f32.mrf.mxu0
        %v775 = vadd.f32 %v752, %v774
        %776 = vdwg.mxu0
        %777 = vrot.lane.b32.xlu0 %v532, 112
        %v778 = vpop.permute.xlu0 %777
        %779 = vrot.lane.b32.xlu0 %v553, 112
        %v780 = vpop.permute.xlu0 %779
        %v781 = vsel %vm576, %v778, 0
        %v783 = vsel %vm576, %v780, 0
        %785 = vmatpush.xpose.msra.mxu0 0.0
        %786 = vmatpush.xpose.msra.mxu0 0.0
        %787 = vmatpush.xpose.msra.mxu0 0.0
        %788 = vmatpush.xpose.msra.mxu0 0.0
        %789 = vmatpush.xpose.msra.mxu0 0.0
        %790 = vmatpush.xpose.msra.mxu0 0.0
        %791 = vmatpush.xpose.msra.mxu0 0.0
        %792 = vmatpush.xpose.msra.mxu0 0.0
        %793 = vmatpush.xpose.msra.mxu0 0.0
        %794 = vmatpush.xpose.msra.mxu0 0.0
        %795 = vmatpush.xpose.msra.mxu0 0.0
        %796 = vmatpush.xpose.msra.mxu0 0.0
        %797 = vmatpush.xpose.msra.mxu0 0.0
        %798 = vmatpush.xpose.msra.mxu0 0.0
        %799 = vmatpush.xpose.msra.mxu0 0.0
        %800 = vmatpush.xpose.msra.mxu0 %v783
        %801 = vmatmul.f32.gmra.mxu0 %v781
        %v802 = vpop.f32.mrf.mxu0
        %v803 = vadd.f32 0.0, %v802
        %804 = vdwg.mxu0
        %v805 = vmul.f32 %v803, 0.35355338
        %v806 = vsel %vm576, %v805, -inf
        %807 = vmax.xlane.f32.xlu0 %v806
        %v808 = vpop.xlane.xlu0 %807
        %v809 = vsub.f32 %v805, %v808
        %v810 = vmul.f32 %v809, 1.442695
        %v811 = vpow.pop %v810
        %v812 = vsel %vm576, %v811, 0.0
        %813 = vadd.xlane.f32.xlu0 %v812
        %v814 = vpop.xlane.xlu0 %813
        %v815 = vrcp.pop %v814
        %v816 = vmul.f32 %v814, %v815
        %v817 = vsub.f32 1.0, %v816
        %v818 = vmul.f32 %v815, %v817
        %v819 = vadd.f32 %v815, %v818
        %vm820 = vweird.f32 %v814
        %vm821 = vweird.f32 %v815
        %vm822 = vmor %vm820, %vm821
        %v823 = vsel %vm822, %v815, %v819
        %v824 = vand.u32 2147483647, %v814
        %vm825 = vcmp.eq.f32.partialorder %v824, 8.507059e+37
        %v826 = vand.u32 %v814, 2147483648
        %v827 = vor.u32 1.1754944e-38, %v826
        %v828 = vsel %vm825, %v827, %v823
        %v829 = vmul.f32 %v811, %v828
        %830 = vrot.lane.b32.xlu0 %v574, 112
        %v831 = vpop.permute.xlu0 %830
        %v834 = vsel %vm576, %v829, 0
        %836 = vmatpush.msra.mxu0 0.0
        %837 = vmatpush.msra.mxu0 0.0
        %838 = vmatpush.msra.mxu0 0.0
        %839 = vmatpush.msra.mxu0 0.0
        %840 = vmatpush.msra.mxu0 0.0
        %841 = vmatpush.msra.mxu0 0.0
        %842 = vmatpush.msra.mxu0 0.0
        %843 = vmatpush.msra.mxu0 0.0
        %844 = vmatpush.msra.mxu0 0.0
        %845 = vmatpush.msra.mxu0 0.0
        %846 = vmatpush.msra.mxu0 0.0
        %847 = vmatpush.msra.mxu0 0.0
        %848 = vmatpush.msra.mxu0 0.0
        %849 = vmatpush.msra.mxu0 0.0
        %850 = vmatpush.msra.mxu0 0.0
        %851 = vmatpush.msra.mxu0 %v831
        %852 = vmatmul.f32.gmra.mxu0 %v834
        %v853 = vpop.f32.mrf.mxu0
        %v854 = vadd.f32 0.0, %v853
        %855 = vdwg.mxu0
        %v857 = vsel %vm576, %v854, 0
        %859 = vmatpush.msra.mxu0 0.0
        %860 = vmatpush.msra.mxu0 0.0
        %861 = vmatpush.msra.mxu0 0.0
        %862 = vmatpush.msra.mxu0 0.0
        %863 = vmatpush.msra.mxu0 0.0
        %864 = vmatpush.msra.mxu0 0.0
        %865 = vmatpush.msra.mxu0 0.0
        %866 = vmatpush.msra.mxu0 0.0
        %867 = vmatpush.msra.mxu0 0.0
        %868 = vmatpush.msra.mxu0 0.0
        %869 = vmatpush.msra.mxu0 0.0
        %870 = vmatpush.msra.mxu0 0.0
        %871 = vmatpush.msra.mxu0 0.0
        %872 = vmatpush.msra.mxu0 0.0
        %873 = vmatpush.msra.mxu0 0.0
        %874 = vmatpush.msra.mxu0 %v495
        %875 = vmatmul.f32.gmra.mxu0 %v857
        %v876 = vpop.f32.mrf.mxu0
        %v877 = vadd.f32 0.0, %v876
        %878 = vdwg.mxu0
        %v879 = vadd.f32 %v775, %v877
        %880 = vrot.lane.b32.xlu0 %v532, 104
        %v881 = vpop.permute.xlu0 %880
        %882 = vrot.lane.b32.xlu0 %v553, 104
        %v883 = vpop.permute.xlu0 %882
        %v884 = vsel %vm576, %v881, 0
        %v886 = vsel %vm576, %v883, 0
        %888 = vmatpush.xpose.msra.mxu0 0.0
        %889 = vmatpush.xpose.msra.mxu0 0.0
        %890 = vmatpush.xpose.msra.mxu0 0.0
        %891 = vmatpush.xpose.msra.mxu0 0.0
        %892 = vmatpush.xpose.msra.mxu0 0.0
        %893 = vmatpush.xpose.msra.mxu0 0.0
        %894 = vmatpush.xpose.msra.mxu0 0.0
        %895 = vmatpush.xpose.msra.mxu0 0.0
        %896 = vmatpush.xpose.msra.mxu0 0.0
        %897 = vmatpush.xpose.msra.mxu0 0.0
        %898 = vmatpush.xpose.msra.mxu0 0.0
        %899 = vmatpush.xpose.msra.mxu0 0.0
        %900 = vmatpush.xpose.msra.mxu0 0.0
        %901 = vmatpush.xpose.msra.mxu0 0.0
        %902 = vmatpush.xpose.msra.mxu0 0.0
        %903 = vmatpush.xpose.msra.mxu0 %v886
        %904 = vmatmul.f32.gmra.mxu0 %v884
        %v905 = vpop.f32.mrf.mxu0
        %v906 = vadd.f32 0.0, %v905
        %907 = vdwg.mxu0
        %v908 = vmul.f32 %v906, 0.35355338
        %v909 = vsel %vm576, %v908, -inf
        %910 = vmax.xlane.f32.xlu0 %v909
        %v911 = vpop.xlane.xlu0 %910
        %v912 = vsub.f32 %v908, %v911
        %v913 = vmul.f32 %v912, 1.442695
        %v914 = vpow.pop %v913
        %v915 = vsel %vm576, %v914, 0.0
        %916 = vadd.xlane.f32.xlu0 %v915
        %v917 = vpop.xlane.xlu0 %916
        %v918 = vrcp.pop %v917
        %v919 = vmul.f32 %v917, %v918
        %v920 = vsub.f32 1.0, %v919
        %v921 = vmul.f32 %v918, %v920
        %v922 = vadd.f32 %v918, %v921
        %vm923 = vweird.f32 %v917
        %vm924 = vweird.f32 %v918
        %vm925 = vmor %vm923, %vm924
        %v926 = vsel %vm925, %v918, %v922
        %v927 = vand.u32 2147483647, %v917
        %vm928 = vcmp.eq.f32.partialorder %v927, 8.507059e+37
        %v929 = vand.u32 %v917, 2147483648
        %v930 = vor.u32 1.1754944e-38, %v929
        %v931 = vsel %vm928, %v930, %v926
        %v932 = vmul.f32 %v914, %v931
        %933 = vrot.lane.b32.xlu0 %v574, 104
        %v934 = vpop.permute.xlu0 %933
        %v937 = vsel %vm576, %v932, 0
        %939 = vmatpush.msra.mxu0 0.0
        %940 = vmatpush.msra.mxu0 0.0
        %941 = vmatpush.msra.mxu0 0.0
        %942 = vmatpush.msra.mxu0 0.0
        %943 = vmatpush.msra.mxu0 0.0
        %944 = vmatpush.msra.mxu0 0.0
        %945 = vmatpush.msra.mxu0 0.0
        %946 = vmatpush.msra.mxu0 0.0
        %947 = vmatpush.msra.mxu0 0.0
        %948 = vmatpush.msra.mxu0 0.0
        %949 = vmatpush.msra.mxu0 0.0
        %950 = vmatpush.msra.mxu0 0.0
        %951 = vmatpush.msra.mxu0 0.0
        %952 = vmatpush.msra.mxu0 0.0
        %953 = vmatpush.msra.mxu0 0.0
        %954 = vmatpush.msra.mxu0 %v934
        %955 = vmatmul.f32.gmra.mxu0 %v937
        %v956 = vpop.f32.mrf.mxu0
        %v957 = vadd.f32 0.0, %v956
        %958 = vdwg.mxu0
        %v960 = vsel %vm576, %v957, 0
        %962 = vmatpush.msra.mxu0 0.0
        %963 = vmatpush.msra.mxu0 0.0
        %964 = vmatpush.msra.mxu0 0.0
        %965 = vmatpush.msra.mxu0 0.0
        %966 = vmatpush.msra.mxu0 0.0
        %967 = vmatpush.msra.mxu0 0.0
        %968 = vmatpush.msra.mxu0 0.0
        %969 = vmatpush.msra.mxu0 0.0
        %970 = vmatpush.msra.mxu0 0.0
        %971 = vmatpush.msra.mxu0 0.0
        %972 = vmatpush.msra.mxu0 0.0
        %973 = vmatpush.msra.mxu0 0.0
        %974 = vmatpush.msra.mxu0 0.0
        %975 = vmatpush.msra.mxu0 0.0
        %976 = vmatpush.msra.mxu0 0.0
        %977 = vmatpush.msra.mxu0 %v496
        %978 = vmatmul.f32.gmra.mxu0 %v960
        %v979 = vpop.f32.mrf.mxu0
        %v980 = vadd.f32 0.0, %v979
        %981 = vdwg.mxu0
        %v982 = vadd.f32 %v879, %v980
        %v983 = vperm.slane %v505, 3
        %v984 = vadd.f32 %v982, %v983
        %v985 = vadd.f32 %v508, %v984
        %v986 = vsel %vm510, %v985, 0.0
        %987 = vadd.xlane.f32.xlu0 %v986
        %v988 = vpop.xlane.xlu0 %987
        %v989 = vrcp.pop 32.0
        %v990 = vmul.f32 32.0, %v989
        %v991 = vsub.f32 1.0, %v990
        %v992 = vmul.f32 %v989, %v991
        %v993 = vadd.f32 %v989, %v992
        %vm994 = vweird.f32 %v989
        %v995 = vsel %vm994, %v989, %v993
        %v996 = vmul.f32 %v988, %v995
        %v997 = vsub.f32 %v985, %v996
        %v998 = vmul.f32 %v997, %v997
        %v999 = vsel %vm510, %v998, 0.0
        %1000 = vadd.xlane.f32.xlu0 %v999
        %v1001 = vpop.xlane.xlu0 %1000
        %v1002 = vmul.f32 %v1001, %v995
        %v1003 = vadd.f32 %v1002, 1e-05
        %v1004 = vrsqrt.pop %v1003
        %v1005 = vmul.f32 %v1004, %v1003
        %v1006 = vmul.f32 %v1005, %v1004
        %v1007 = vmul.f32 0.5, %v1006
        %v1008 = vsub.f32 1.5, %v1007
        %v1009 = vmul.f32 %v1004, %v1008
        %vm1010 = vweird.f32 %v1003
        %vm1011 = vweird.f32 %v1004
        %vm1012 = vmor %vm1010, %vm1011
        %v1013 = vsel %vm1012, %v1004, %v1009
        %v1014 = vmul.f32 %v997, %v1013
        %v1015 = vperm.slane %v505, 6
        %v1016 = vmul.f32 %v1014, %v1015
        %v1017 = vperm.slane %v505, 7
        %v1018 = vadd.f32 %v1016, %v1017
        %v1019 = vperm.slane %v505, 4
        %v1021 = vsel %vm510, %v1018, 0
        %1023 = vmatpush.msra.mxu0 0.0
        %1024 = vmatpush.msra.mxu0 0.0
        %1025 = vmatpush.msra.mxu0 0.0
        %1026 = vmatpush.msra.mxu0 0.0
        %1027 = vmatpush.msra.mxu0 0.0
        %1028 = vmatpush.msra.mxu0 0.0
        %1029 = vmatpush.msra.mxu0 0.0
        %1030 = vmatpush.msra.mxu0 0.0
        %1031 = vmatpush.msra.mxu0 0.0
        %1032 = vmatpush.msra.mxu0 0.0
        %1033 = vmatpush.msra.mxu0 0.0
        %1034 = vmatpush.msra.mxu0 0.0
        %1035 = vmatpush.msra.mxu0 %v500
        %1036 = vmatpush.msra.mxu0 %v499
        %1037 = vmatpush.msra.mxu0 %v498
        %1038 = vmatpush.msra.mxu0 %v497
        %1039 = vmatmul.f32.gmra.mxu0 %v1021
        %v1040 = vpop.f32.mrf.mxu0
        %v1041 = vadd.f32 %v1019, %v1040
        %1042 = vdwg.mxu0
        %v1043 = vmax.f32 %v1041, 0.0
        %v1044 = vperm.slane %v505, 5
        %v1046 = vsel %vm510, %v1043, 0
        %1048 = vmatpush.msra.mxu0 0.0
        %1049 = vmatpush.msra.mxu0 0.0
        %1050 = vmatpush.msra.mxu0 0.0
        %1051 = vmatpush.msra.mxu0 0.0
        %1052 = vmatpush.msra.mxu0 0.0
        %1053 = vmatpush.msra.mxu0 0.0
        %1054 = vmatpush.msra.mxu0 0.0
        %1055 = vmatpush.msra.mxu0 0.0
        %1056 = vmatpush.msra.mxu0 0.0
        %1057 = vmatpush.msra.mxu0 0.0
        %1058 = vmatpush.msra.mxu0 0.0
        %1059 = vmatpush.msra.mxu0 0.0
        %1060 = vmatpush.msra.mxu0 %v504
        %1061 = vmatpush.msra.mxu0 %v503
        %1062 = vmatpush.msra.mxu0 %v502
        %1063 = vmatpush.msra.mxu0 %v501
        %1064 = vmatmul.f32.gmra.mxu0 %v1046
        %v1065 = vpop.f32.mrf.mxu0
        %v1066 = vadd.f32 %v1044, %v1065
        %1067 = vdwg.mxu0
        %v1068 = vadd.f32 %v1018, %v1066
        %v1069 = vsel %vm510, %v1068, 0.0
        %1070 = vadd.xlane.f32.xlu0 %v1069
        %v1071 = vpop.xlane.xlu0 %1070
        %v1072 = vmul.f32 %v1071, %v995
        %v1073 = vsub.f32 %v1068, %v1072
        %v1074 = vmul.f32 %v1073, %v1073
        %v1075 = vsel %vm510, %v1074, 0.0
        %1076 = vadd.xlane.f32.xlu0 %v1075
        %v1077 = vpop.xlane.xlu0 %1076
        %v1078 = vmul.f32 %v1077, %v995
        %v1079 = vadd.f32 %v1078, 1e-05
        %v1080 = vrsqrt.pop %v1079
        %v1081 = vmul.f32 %v1080, %v1079
        %v1082 = vmul.f32 %v1081, %v1080
        %v1083 = vmul.f32 0.5, %v1082
        %v1084 = vsub.f32 1.5, %v1083
        %v1085 = vmul.f32 %v1080, %v1084
        %vm1086 = vweird.f32 %v1079
        %vm1087 = vweird.f32 %v1080
        %vm1088 = vmor %vm1086, %vm1087
        %v1089 = vsel %vm1088, %v1080, %v1085
        %v1090 = vmul.f32 %v1073, %v1089
        %v1091 = vperm.slane %v506, 0
        %v1092 = vmul.f32 %v1090, %v1091
        %v1093 = vperm.slane %v506, 1
        %v1094 = vadd.f32 %v1092, %v1093
        %1095 = vst.msk [vmem:[%s479] sm:$0xff] %vm510, %v1094
        %s1096 = sand.u32 %s232, 1
        %s1097 = scalar_lea.sflag [#allocation4], %s1096
        %s1098 = sand.u32 %s232, 1
        %s1099 = smul.addr %s1098, 8
        %s1100 = scalar_lea.vmem [#allocation17], %s1099
        // Predicated region
        $region93: #{tpu_custom_call.1} parent=55 // pred_check
          %p1101 = pneg %p242
        $region94: #{tpu_custom_call.1} parent=55 // pred_check_branch
          %1103 = sbr.rel (%p1101) target = $region96
        $region95: #{tpu_custom_call.1} parent=55 // pred_region
          %1105 = vsyncadd %s1097, 0
          %s1106 = smul.addr %s30, 8
          %s1107 = scalar_lea.hbm %s9, %s1106
          %s1109 = sshll.u32 %s1100, 4
          %s1110 = int_to_ptr.vmem [resolvable:$true] %s1109
          %s1111 = sshll.u32 %s1107, 4
          %s1112 = int_to_ptr.hbm [resolvable:$true] %s1111
          %1114 = dma.vmem_to_hbm [thread:$0]  %s1110, 128, %s1112, %s1097
        $region96: #{tpu_custom_call.1} parent=55 // pred_fallthru
          _
      $region56: #{tpu_custom_call.1} parent=5 // pred_fallthru
        _
      %p1115 = scmp.le.s32.totalorder 2, %s25
      // Predicated region
      $region97: #{tpu_custom_call.1} parent=5 // pred_check
        %p1116 = pneg %p1115
      $region98: #{tpu_custom_call.1} parent=5 // pred_check_branch
        %1118 = sbr.rel (%p1116) target = $region100
      $region99: #{tpu_custom_call.1} parent=5 // pred_region
        %s1119 = ssub.s32 %s25, 2
        // Predicated region
        $region101: #{tpu_custom_call.1} parent=99 // pred_check
          %p1120 = pneg %p248
        $region102: #{tpu_custom_call.1} parent=99 // pred_check_branch
          %1122 = sbr.rel (%p1120) target = $region104
        $region103: #{tpu_custom_call.1} parent=99 // pred_region
          %s1123 = sand.u32 %s233, 1
          %s1124 = scalar_lea.sflag [#allocation4], %s1123
          %s1125 = sand.u32 %s233, 1
          %s1126 = smul.addr %s1125, 8
          %s1127 = scalar_lea.vmem [#allocation17], %s1126
          %1129 = dma.done %s1124, 128
        $region104: #{tpu_custom_call.1} parent=99 // pred_fallthru
          _
      $region100: #{tpu_custom_call.1} parent=5 // pred_fallthru
        _
    $region6: #{tpu_custom_call.1} parent=1 // loop_footer
      %s29 = sadd.s32 1, %s25
    $region7: #{tpu_custom_call.1} parent=1 // loop_footer_branch
      %24 = sbr.rel target = $region3
    $region8: #{tpu_custom_call.1} parent=1 // loop_exit
      _
    %1130 = vsyncpa [#allocation3], 1
    %s1131 = scalar_lea.sflag [#allocation3], 1
    %1132 = vsyncpa %s1131, 1
    %1133 = vsyncpa [#allocation6], 1
    %1134 = vsyncpa [#allocation9], 1
    %1135 = vsyncpa [#allocation12], 1
    %1136 = vsyncpa [#allocation15], 1
    %1137 = vsyncpa [#allocation4], 1
    %s1138 = scalar_lea.sflag [#allocation4], 1
    %1139 = vsyncpa %s1138, 1

</llo_original>
